<compile_context>
chip_gen: v7x
topology: tpu7x:2x2x1
jax: 0.10.0
libtpu: 0.0.40
codegen_flags: <defaults>
</compile_context>

<pallas_src>
import jax
import jax.numpy as jnp
from jax.experimental import pallas as pl
from jax.experimental.pallas import tpu as pltpu


def make_attention_kernel(num_heads, head_dim, block_q, n_kv, dim):
    def kernel(x_ref, wq_ref, wk_ref, wv_ref, wp_ref, bp_ref, o_ref,
               k_sc, v_sc, oh_sc):
        # ---- project K/V once per batch element with wide C->C matmuls, ----
        # ---- then relayout head-major into persistent VMEM scratch.     ----
        # NOTE: relies on grid axis 1 being "arbitrary" (sequential per core)
        # so the cache written at strip 0 is still valid at strips i > 0.
        @pl.when(pl.program_id(1) == 0)
        def _():
            xkv = x_ref[...].astype(jnp.bfloat16)                         # (n_kv, C)
            k_all = jnp.dot(xkv, wk_ref[...],
                            preferred_element_type=jnp.float32).astype(jnp.bfloat16)
            v_all = jnp.dot(xkv, wv_ref[...],
                            preferred_element_type=jnp.float32).astype(jnp.bfloat16)
            for h in range(num_heads):
                k_sc[h] = k_all[:, h * head_dim:(h + 1) * head_dim]
                v_sc[h] = v_all[:, h * head_dim:(h + 1) * head_dim]

        # ---- query strip sliced from the already-resident token block ----
        start = pl.multiple_of(pl.program_id(1) * block_q, block_q)
        xq = x_ref[pl.ds(start, block_q), :].astype(jnp.bfloat16)         # (bq, C)

        # ---- Q projection: one C-wide matmul (scale pre-folded into Wq) ----
        q_all = jnp.dot(xq, wq_ref[...],
                        preferred_element_type=jnp.float32).astype(jnp.bfloat16)

        # ---- per-head attention; head outputs land in lane slices of oh_sc ----
        # No f32 accumulator is carried across this loop (only ref writes), so
        # static unrolling does not force spills.
        for h in range(num_heads):
            qh = q_all[:, h * head_dim:(h + 1) * head_dim]                 # (bq, hd)
            s = jnp.einsum('qd,kd->qk', qh, k_sc[h],
                           preferred_element_type=jnp.float32)             # (bq, n_kv)
            s = s - jnp.max(s, axis=-1, keepdims=True)
            p = jnp.exp(s)
            p = p * (1.0 / jnp.sum(p, axis=-1, keepdims=True))             # exact normalize
            oh = jnp.dot(p.astype(jnp.bfloat16), v_sc[h],
                         preferred_element_type=jnp.float32)               # (bq, hd)
            oh_sc[:, h * head_dim:(h + 1) * head_dim] = oh.astype(jnp.bfloat16)

        # ---- fused output projection: single (bq, C) @ (C, C) matmul ----
        y = jnp.dot(oh_sc[...], wp_ref[...], preferred_element_type=jnp.float32)
        o_ref[...] = (y + bp_ref[...]).astype(o_ref.dtype)

    return kernel


def attention_forward(x, params, H, W, num_heads, block_q=128, sr_ratio=1):
    """x: (B, N, C) float32 with N == H*W.

    params = (wq, wk, wv, wproj, bproj) in the `x @ W` layout (i.e. already
    transposed relative to torch.nn.Linear.weight).
    """
    # TODO(synk): sr_ratio > 1 path (strided Conv2d spatial reduction + LayerNorm
    # before the kv projection) is not implemented; kernel covers sr_ratio == 1.
    assert sr_ratio == 1
    B, N, C = x.shape
    assert N == H * W
    wq, wk, wv, wp, bp = params
    assert C % num_heads == 0
    hd = C // num_heads
    scale = float(hd) ** -0.5

    block_q = min(block_q, N)
    assert N % block_q == 0 and block_q % 8 == 0

    # Full-width bf16 weights; attention scale folded into Wq.
    wq_s = (wq * scale).astype(jnp.bfloat16)
    wk_b = wk.astype(jnp.bfloat16)
    wv_b = wv.astype(jnp.bfloat16)
    wp_b = wp.astype(jnp.bfloat16)
    bp2 = bp.reshape(1, C).astype(jnp.float32)

    kernel = make_attention_kernel(num_heads, hd, block_q, N, C)

    # VMEM footprint (double-buffered blocks + persistent scratch) -> size the
    # limit from it (with margin) instead of a blanket cap, so v7x (64 MiB)
    # keeps headroom.
    blk_bytes = (
        2 * N * C * 4 +          # x token block (f32), double-buffered
        2 * 4 * C * C * 2 +      # four C x C bf16 weight blocks
        2 * 8 * C * 4 +          # bias (padded row block)
        2 * block_q * C * 4      # output block (f32)
    )
    scratch_bytes = 2 * num_heads * N * hd * 2 + block_q * C * 2
    vmem_limit = int(1.5 * (blk_bytes + scratch_bytes)) + 8 * 1024 * 1024
    vmem_limit = max(16 * 1024 * 1024, min(vmem_limit, 64 * 1024 * 1024))

    grid_spec = pltpu.PrefetchScalarGridSpec(
        num_scalar_prefetch=0,
        grid=(B, N // block_q),
        in_specs=[
            pl.BlockSpec((None, N, C), lambda b, i: (b, 0, 0)),   # tokens: Q source + K/V source
            pl.BlockSpec((C, C), lambda b, i: (0, 0)),            # Wq (pre-scaled)
            pl.BlockSpec((C, C), lambda b, i: (0, 0)),            # Wk
            pl.BlockSpec((C, C), lambda b, i: (0, 0)),            # Wv
            pl.BlockSpec((C, C), lambda b, i: (0, 0)),            # Wproj
            pl.BlockSpec((1, C), lambda b, i: (0, 0)),            # bproj
        ],
        out_specs=pl.BlockSpec((None, block_q, C), lambda b, i: (b, i, 0)),
        scratch_shapes=[
            pltpu.VMEM((num_heads, N, hd), jnp.bfloat16),   # cached K (head-major)
            pltpu.VMEM((num_heads, N, hd), jnp.bfloat16),   # cached V (head-major)
            pltpu.VMEM((block_q, C), jnp.bfloat16),         # per-strip head outputs
        ],
    )

    return pl.pallas_call(
        kernel,
        out_shape=jax.ShapeDtypeStruct((B, N, C), x.dtype),
        grid_spec=grid_spec,
        compiler_params=pltpu.CompilerParams(
            # Batch axis shards across TensorCores; the strip axis MUST stay
            # "arbitrary": the K/V scratch cache written at strip 0 is reused
            # by later strips of the same batch element.
            # TODO(synk): for v7x with B == 1, add a core-parallel split of the
            # strip axis (with per-core K/V recompute) to occupy both TCs.
            dimension_semantics=("parallel", "arbitrary"),
            vmem_limit_bytes=vmem_limit,
        ),
    )(x, wq_s, wk_b, wv_b, wp_b, bp2)


def attention_ref(x, params, num_heads):
    """Pure-JAX f32 reference matching the PyTorch module (sr_ratio=1)."""
    wq, wk, wv, wp, bp = params
    B, N, C = x.shape
    hd = C // num_heads
    scale = float(hd) ** -0.5
    q = (x @ wq).reshape(B, N, num_heads, hd).transpose(0, 2, 1, 3)
    k = (x @ wk).reshape(B, N, num_heads, hd).transpose(0, 2, 1, 3)
    v = (x @ wv).reshape(B, N, num_heads, hd).transpose(0, 2, 1, 3)
    attn = jnp.einsum('bhqd,bhkd->bhqk', q, k) * scale
    attn = jax.nn.softmax(attn, axis=-1)
    o = jnp.einsum('bhqk,bhkd->bhqd', attn, v)
    o = o.transpose(0, 2, 1, 3).reshape(B, N, C)
    return o @ wp + bp


def init_params(key, dim):
    # nn.Linear weights: trunc_normal(std=0.02) approximated by normal*0.02;
    # qkv_bias=False (default), proj bias initialized to zero.
    kq, kk, kv, kp = jax.random.split(key, 4)
    wq = jax.random.normal(kq, (dim, dim), jnp.float32) * 0.02
    wk = jax.random.normal(kk, (dim, dim), jnp.float32) * 0.02
    wv = jax.random.normal(kv, (dim, dim), jnp.float32) * 0.02
    wp = jax.random.normal(kp, (dim, dim), jnp.float32) * 0.02
    bp = jnp.zeros((dim,), jnp.float32)
    return (wq, wk, wv, wp, bp)


if __name__ == "__main__":
    B, H, W = 2, 16, 16
    N = H * W                 # 256 tokens -> 2 query strips per batch element
    C = 128                   # dim (lane-dense output)
    num_heads = 2             # head_dim = 64

    key = jax.random.PRNGKey(0)
    kx, kparams = jax.random.split(key)
    x = jax.random.normal(kx, (B, N, C), jnp.float32)
    params = init_params(kparams, C)

    out = attention_forward(x, params, H, W, num_heads=num_heads, block_q=128)
    jax.block_until_ready(out)
    assert out.shape == (B, N, C)

    # Tolerance check against the f32 pure-JAX reference; remaining error comes
    # only from bf16 MXU operands (softmax normalization is exact f32).
    ref = attention_ref(x, params, num_heads)
    rel = jnp.linalg.norm(out - ref) / jnp.linalg.norm(ref)
    assert float(rel) < 2e-2, f"relative error too large: {float(rel)}"

    print("KERNEL_OK")
</pallas_src>

<mosaic_0001>
module attributes {stable_mosaic.version = 11 : i64} {
  func.func @kernel(%arg0: i32, %arg1: i32, %arg2: memref<1x256x128xf32, #tpu.memory_space<vmem>>, %arg3: memref<128x128xbf16, #tpu.memory_space<vmem>>, %arg4: memref<128x128xbf16, #tpu.memory_space<vmem>>, %arg5: memref<128x128xbf16, #tpu.memory_space<vmem>>, %arg6: memref<128x128xbf16, #tpu.memory_space<vmem>>, %arg7: memref<1x128xf32, #tpu.memory_space<vmem>>, %arg8: memref<1x128x128xf32, #tpu.memory_space<vmem>>, %arg9: memref<2x256x64xbf16, #tpu.memory_space<vmem>>, %arg10: memref<2x256x64xbf16, #tpu.memory_space<vmem>>, %arg11: memref<128x128xbf16, #tpu.memory_space<vmem>>) attributes {dimension_semantics = [#tpu.dimension_semantics<parallel>, #tpu.dimension_semantics<arbitrary>], iteration_bounds = array<i64: 2, 2>, scalar_prefetch = 0 : i64, scratch_operands = 3 : i64, tpu.core_type = #tpu.core_type<tc>, window_params = [{transform_indices = @transform_0, window_bounds = array<i64: 1, 256, 128>}, {pipeline_mode = #tpu.pipeline_mode<synchronous>, transform_indices = @transform_1, window_bounds = array<i64: 128, 128>}, {pipeline_mode = #tpu.pipeline_mode<synchronous>, transform_indices = @transform_2, window_bounds = array<i64: 128, 128>}, {pipeline_mode = #tpu.pipeline_mode<synchronous>, transform_indices = @transform_3, window_bounds = array<i64: 128, 128>}, {pipeline_mode = #tpu.pipeline_mode<synchronous>, transform_indices = @transform_4, window_bounds = array<i64: 128, 128>}, {pipeline_mode = #tpu.pipeline_mode<synchronous>, transform_indices = @transform_5, window_bounds = array<i64: 1, 128>}, {transform_indices = @transform_6, window_bounds = array<i64: 1, 128, 128>}]} {
    %c0_i32 = arith.constant 0 : i32
    %0 = arith.cmpi eq, %arg1, %c0_i32 : i32
    %1 = arith.extui %0 : i1 to i32
    %c0_i32_0 = arith.constant 0 : i32
    %2 = arith.cmpi ne, %1, %c0_i32_0 : i32
    scf.if %2 {
      %c0_38 = arith.constant 0 : index
      %c0_39 = arith.constant 0 : index
      %c0_40 = arith.constant 0 : index
      %63 = vector.load %arg2[%c0_38, %c0_39, %c0_40] : memref<1x256x128xf32, #tpu.memory_space<vmem>>, vector<1x256x128xf32>
      %64 = vector.shape_cast %63 : vector<1x256x128xf32> to vector<256x128xf32>
      %65 = arith.truncf %64 : vector<256x128xf32> to vector<256x128xbf16>
      %c0_41 = arith.constant 0 : index
      %c0_42 = arith.constant 0 : index
      %66 = vector.load %arg4[%c0_41, %c0_42] : memref<128x128xbf16, #tpu.memory_space<vmem>>, vector<128x128xbf16>
      %cst_43 = arith.constant dense<0.000000e+00> : vector<256x128xf32>
      %67 = tpu.matmul %65, %66, %cst_43 {dimension_numbers = #tpu.dot_dimension_numbers<[1], [0], [0], [1], [0, 0, 1, 1], [], []>} : vector<256x128xbf16>, vector<128x128xbf16>, vector<256x128xf32> -> vector<256x128xf32>
      %68 = arith.truncf %67 : vector<256x128xf32> to vector<256x128xbf16>
      %c0_44 = arith.constant 0 : index
      %c0_45 = arith.constant 0 : index
      %69 = vector.load %arg5[%c0_44, %c0_45] : memref<128x128xbf16, #tpu.memory_space<vmem>>, vector<128x128xbf16>
      %cst_46 = arith.constant dense<0.000000e+00> : vector<256x128xf32>
      %70 = tpu.matmul %65, %69, %cst_46 {dimension_numbers = #tpu.dot_dimension_numbers<[1], [0], [0], [1], [0, 0, 1, 1], [], []>} : vector<256x128xbf16>, vector<128x128xbf16>, vector<256x128xf32> -> vector<256x128xf32>
      %71 = arith.truncf %70 : vector<256x128xf32> to vector<256x128xbf16>
      %72 = vector.extract_strided_slice %68 {offsets = [0, 0], sizes = [256, 64], strides = [1, 1]} : vector<256x128xbf16> to vector<256x64xbf16>
      %c0_47 = arith.constant 0 : index
      %c0_48 = arith.constant 0 : index
      %c0_49 = arith.constant 0 : index
      %73 = vector.load %arg9[%c0_47, %c0_48, %c0_49] : memref<2x256x64xbf16, #tpu.memory_space<vmem>>, vector<1x256x64xbf16>
      %74 = vector.shape_cast %73 : vector<1x256x64xbf16> to vector<256x64xbf16>
      %75 = vector.shape_cast %72 : vector<256x64xbf16> to vector<1x256x64xbf16>
      tpu.vector_store %arg9[%c0_47, %c0_48, %c0_49], %75 {strides = array<i32>} : memref<2x256x64xbf16, #tpu.memory_space<vmem>>, vector<1x256x64xbf16>,
      %76 = vector.extract_strided_slice %71 {offsets = [0, 0], sizes = [256, 64], strides = [1, 1]} : vector<256x128xbf16> to vector<256x64xbf16>
      %c0_50 = arith.constant 0 : index
      %c0_51 = arith.constant 0 : index
      %c0_52 = arith.constant 0 : index
      %77 = vector.load %arg10[%c0_50, %c0_51, %c0_52] : memref<2x256x64xbf16, #tpu.memory_space<vmem>>, vector<1x256x64xbf16>
      %78 = vector.shape_cast %77 : vector<1x256x64xbf16> to vector<256x64xbf16>
      %79 = vector.shape_cast %76 : vector<256x64xbf16> to vector<1x256x64xbf16>
      tpu.vector_store %arg10[%c0_50, %c0_51, %c0_52], %79 {strides = array<i32>} : memref<2x256x64xbf16, #tpu.memory_space<vmem>>, vector<1x256x64xbf16>,
      %80 = vector.extract_strided_slice %68 {offsets = [0, 64], sizes = [256, 64], strides = [1, 1]} : vector<256x128xbf16> to vector<256x64xbf16>
      %c1_53 = arith.constant 1 : index
      %c0_54 = arith.constant 0 : index
      %c0_55 = arith.constant 0 : index
      %81 = vector.load %arg9[%c1_53, %c0_54, %c0_55] : memref<2x256x64xbf16, #tpu.memory_space<vmem>>, vector<1x256x64xbf16>
      %82 = vector.shape_cast %81 : vector<1x256x64xbf16> to vector<256x64xbf16>
      %83 = vector.shape_cast %80 : vector<256x64xbf16> to vector<1x256x64xbf16>
      tpu.vector_store %arg9[%c1_53, %c0_54, %c0_55], %83 {strides = array<i32>} : memref<2x256x64xbf16, #tpu.memory_space<vmem>>, vector<1x256x64xbf16>,
      %84 = vector.extract_strided_slice %71 {offsets = [0, 64], sizes = [256, 64], strides = [1, 1]} : vector<256x128xbf16> to vector<256x64xbf16>
      %c1_56 = arith.constant 1 : index
      %c0_57 = arith.constant 0 : index
      %c0_58 = arith.constant 0 : index
      %85 = vector.load %arg10[%c1_56, %c0_57, %c0_58] : memref<2x256x64xbf16, #tpu.memory_space<vmem>>, vector<1x256x64xbf16>
      %86 = vector.shape_cast %85 : vector<1x256x64xbf16> to vector<256x64xbf16>
      %87 = vector.shape_cast %84 : vector<256x64xbf16> to vector<1x256x64xbf16>
      tpu.vector_store %arg10[%c1_56, %c0_57, %c0_58], %87 {strides = array<i32>} : memref<2x256x64xbf16, #tpu.memory_space<vmem>>, vector<1x256x64xbf16>,
    } else {
    }
    %c128_i32 = arith.constant 128 : i32
    %3 = arith.muli %arg1, %c128_i32 : i32
    %4 = tpu.assume_multiple %3, 128 : i32
    %c0 = arith.constant 0 : index
    %5 = arith.index_cast %4 : i32 to index
    %c0_1 = arith.constant 0 : index
    %6 = vector.load %arg2[%c0, %5, %c0_1] : memref<1x256x128xf32, #tpu.memory_space<vmem>>, vector<1x128x128xf32>
    %7 = vector.shape_cast %6 : vector<1x128x128xf32> to vector<128x128xf32>
    %8 = arith.truncf %7 : vector<128x128xf32> to vector<128x128xbf16>
    %c0_2 = arith.constant 0 : index
    %c0_3 = arith.constant 0 : index
    %9 = vector.load %arg3[%c0_2, %c0_3] : memref<128x128xbf16, #tpu.memory_space<vmem>>, vector<128x128xbf16>
    %cst = arith.constant dense<0.000000e+00> : vector<128x128xf32>
    %10 = tpu.matmul %8, %9, %cst {dimension_numbers = #tpu.dot_dimension_numbers<[1], [0], [0], [1], [0, 0, 1, 1], [], []>} : vector<128x128xbf16>, vector<128x128xbf16>, vector<128x128xf32> -> vector<128x128xf32>
    %11 = arith.truncf %10 : vector<128x128xf32> to vector<128x128xbf16>
    %12 = vector.extract_strided_slice %11 {offsets = [0, 0], sizes = [128, 64], strides = [1, 1]} : vector<128x128xbf16> to vector<128x64xbf16>
    %c0_4 = arith.constant 0 : index
    %c0_5 = arith.constant 0 : index
    %c0_6 = arith.constant 0 : index
    %13 = vector.load %arg9[%c0_4, %c0_5, %c0_6] : memref<2x256x64xbf16, #tpu.memory_space<vmem>>, vector<1x256x64xbf16>
    %14 = vector.shape_cast %13 : vector<1x256x64xbf16> to vector<256x64xbf16>
    "tpu.trace_start"() <{level = 10 : i32, message = "qd,kd->qk"}> : () -> ()
    %cst_7 = arith.constant dense<0.000000e+00> : vector<128x256xf32>
    %15 = tpu.matmul %12, %14, %cst_7 {dimension_numbers = #tpu.dot_dimension_numbers<[1], [1], [0], [0], [0, 0, 1, 0], [], []>} : vector<128x64xbf16>, vector<256x64xbf16>, vector<128x256xf32> -> vector<128x256xf32>
    "tpu.trace_stop"() : () -> ()
    %cst_8 = arith.constant dense<0xFF800000> : vector<128xf32>
    %16 = vector.multi_reduction <maximumf>, %15, %cst_8 [1] : vector<128x256xf32> to vector<128xf32>
    %17 = vector.shape_cast %16 : vector<128xf32> to vector<128x1xf32>
    %18 = vector.broadcast %17 : vector<128x1xf32> to vector<128x256xf32>
    %19 = arith.subf %15, %18 : vector<128x256xf32>
    %20 = math.exp %19 : vector<128x256xf32>
    %cst_9 = arith.constant dense<0.000000e+00> : vector<128xf32>
    %21 = vector.multi_reduction <add>, %20, %cst_9 [1] : vector<128x256xf32> to vector<128xf32>
    %22 = vector.shape_cast %21 : vector<128xf32> to vector<128x1xf32>
    %cst_10 = arith.constant 1.000000e+00 : f32
    %23 = vector.broadcast %cst_10 : f32 to vector<128x1xf32>
    %24 = arith.divf %23, %22 : vector<128x1xf32>
    %25 = vector.broadcast %24 : vector<128x1xf32> to vector<128x256xf32>
    %26 = arith.mulf %20, %25 : vector<128x256xf32>
    %27 = arith.truncf %26 : vector<128x256xf32> to vector<128x256xbf16>
    %c0_11 = arith.constant 0 : index
    %c0_12 = arith.constant 0 : index
    %c0_13 = arith.constant 0 : index
    %28 = vector.load %arg10[%c0_11, %c0_12, %c0_13] : memref<2x256x64xbf16, #tpu.memory_space<vmem>>, vector<1x256x64xbf16>
    %29 = vector.shape_cast %28 : vector<1x256x64xbf16> to vector<256x64xbf16>
    %cst_14 = arith.constant dense<0.000000e+00> : vector<128x64xf32>
    %30 = tpu.matmul %27, %29, %cst_14 {dimension_numbers = #tpu.dot_dimension_numbers<[1], [0], [0], [1], [0, 0, 1, 1], [], []>} : vector<128x256xbf16>, vector<256x64xbf16>, vector<128x64xf32> -> vector<128x64xf32>
    %31 = arith.truncf %30 : vector<128x64xf32> to vector<128x64xbf16>
    %c0_15 = arith.constant 0 : index
    %c0_16 = arith.constant 0 : index
    %32 = vector.load %arg11[%c0_15, %c0_16] : memref<128x128xbf16, #tpu.memory_space<vmem>>, vector<128x64xbf16>
    tpu.vector_store %arg11[%c0_15, %c0_16], %31 {strides = array<i32>} : memref<128x128xbf16, #tpu.memory_space<vmem>>, vector<128x64xbf16>,
    %33 = vector.extract_strided_slice %11 {offsets = [0, 64], sizes = [128, 64], strides = [1, 1]} : vector<128x128xbf16> to vector<128x64xbf16>
    %c1 = arith.constant 1 : index
    %c0_17 = arith.constant 0 : index
    %c0_18 = arith.constant 0 : index
    %34 = vector.load %arg9[%c1, %c0_17, %c0_18] : memref<2x256x64xbf16, #tpu.memory_space<vmem>>, vector<1x256x64xbf16>
    %35 = vector.shape_cast %34 : vector<1x256x64xbf16> to vector<256x64xbf16>
    "tpu.trace_start"() <{level = 10 : i32, message = "qd,kd->qk"}> : () -> ()
    %cst_19 = arith.constant dense<0.000000e+00> : vector<128x256xf32>
    %36 = tpu.matmul %33, %35, %cst_19 {dimension_numbers = #tpu.dot_dimension_numbers<[1], [1], [0], [0], [0, 0, 1, 0], [], []>} : vector<128x64xbf16>, vector<256x64xbf16>, vector<128x256xf32> -> vector<128x256xf32>
    "tpu.trace_stop"() : () -> ()
    %cst_20 = arith.constant dense<0xFF800000> : vector<128xf32>
    %37 = vector.multi_reduction <maximumf>, %36, %cst_20 [1] : vector<128x256xf32> to vector<128xf32>
    %38 = vector.shape_cast %37 : vector<128xf32> to vector<128x1xf32>
    %39 = vector.broadcast %38 : vector<128x1xf32> to vector<128x256xf32>
    %40 = arith.subf %36, %39 : vector<128x256xf32>
    %41 = math.exp %40 : vector<128x256xf32>
    %cst_21 = arith.constant dense<0.000000e+00> : vector<128xf32>
    %42 = vector.multi_reduction <add>, %41, %cst_21 [1] : vector<128x256xf32> to vector<128xf32>
    %43 = vector.shape_cast %42 : vector<128xf32> to vector<128x1xf32>
    %cst_22 = arith.constant 1.000000e+00 : f32
    %44 = vector.broadcast %cst_22 : f32 to vector<128x1xf32>
    %45 = arith.divf %44, %43 : vector<128x1xf32>
    %46 = vector.broadcast %45 : vector<128x1xf32> to vector<128x256xf32>
    %47 = arith.mulf %41, %46 : vector<128x256xf32>
    %48 = arith.truncf %47 : vector<128x256xf32> to vector<128x256xbf16>
    %c1_23 = arith.constant 1 : index
    %c0_24 = arith.constant 0 : index
    %c0_25 = arith.constant 0 : index
    %49 = vector.load %arg10[%c1_23, %c0_24, %c0_25] : memref<2x256x64xbf16, #tpu.memory_space<vmem>>, vector<1x256x64xbf16>
    %50 = vector.shape_cast %49 : vector<1x256x64xbf16> to vector<256x64xbf16>
    %cst_26 = arith.constant dense<0.000000e+00> : vector<128x64xf32>
    %51 = tpu.matmul %48, %50, %cst_26 {dimension_numbers = #tpu.dot_dimension_numbers<[1], [0], [0], [1], [0, 0, 1, 1], [], []>} : vector<128x256xbf16>, vector<256x64xbf16>, vector<128x64xf32> -> vector<128x64xf32>
    %52 = arith.truncf %51 : vector<128x64xf32> to vector<128x64xbf16>
    %c0_27 = arith.constant 0 : index
    %c64 = arith.constant 64 : index
    %53 = vector.load %arg11[%c0_27, %c64] : memref<128x128xbf16, #tpu.memory_space<vmem>>, vector<128x64xbf16>
    tpu.vector_store %arg11[%c0_27, %c64], %52 {strides = array<i32>} : memref<128x128xbf16, #tpu.memory_space<vmem>>, vector<128x64xbf16>,
    %c0_28 = arith.constant 0 : index
    %c0_29 = arith.constant 0 : index
    %54 = vector.load %arg11[%c0_28, %c0_29] : memref<128x128xbf16, #tpu.memory_space<vmem>>, vector<128x128xbf16>
    %c0_30 = arith.constant 0 : index
    %c0_31 = arith.constant 0 : index
    %55 = vector.load %arg6[%c0_30, %c0_31] : memref<128x128xbf16, #tpu.memory_space<vmem>>, vector<128x128xbf16>
    %cst_32 = arith.constant dense<0.000000e+00> : vector<128x128xf32>
    %56 = tpu.matmul %54, %55, %cst_32 {dimension_numbers = #tpu.dot_dimension_numbers<[1], [0], [0], [1], [0, 0, 1, 1], [], []>} : vector<128x128xbf16>, vector<128x128xbf16>, vector<128x128xf32> -> vector<128x128xf32>
    %c0_33 = arith.constant 0 : index
    %c0_34 = arith.constant 0 : index
    %57 = vector.load %arg7[%c0_33, %c0_34] : memref<1x128xf32, #tpu.memory_space<vmem>>, vector<1x128xf32>
    %58 = vector.broadcast %57 : vector<1x128xf32> to vector<128x128xf32>
    %59 = arith.addf %56, %58 : vector<128x128xf32>
    %c0_35 = arith.constant 0 : index
    %c0_36 = arith.constant 0 : index
    %c0_37 = arith.constant 0 : index
    %60 = vector.load %arg8[%c0_35, %c0_36, %c0_37] : memref<1x128x128xf32, #tpu.memory_space<vmem>>, vector<1x128x128xf32>
    %61 = vector.shape_cast %60 : vector<1x128x128xf32> to vector<128x128xf32>
    %62 = vector.shape_cast %59 : vector<128x128xf32> to vector<1x128x128xf32>
    tpu.vector_store %arg8[%c0_35, %c0_36, %c0_37], %62 {strides = array<i32>} : memref<1x128x128xf32, #tpu.memory_space<vmem>>, vector<1x128x128xf32>,
    return
  }
  func.func @transform_0(%arg0: i32, %arg1: i32) -> (i32, i32, i32) {
    %c0_i32 = arith.constant 0 : i32
    %c0_i32_0 = arith.constant 0 : i32
    %c0_i32_1 = arith.constant 0 : i32
    return %arg0, %c0_i32, %c0_i32_0 : i32, i32, i32
  }
  func.func @transform_1(%arg0: i32, %arg1: i32) -> (i32, i32) {
    %c0_i32 = arith.constant 0 : i32
    %c0_i32_0 = arith.constant 0 : i32
    %c0_i32_1 = arith.constant 0 : i32
    return %c0_i32, %c0_i32_0 : i32, i32
  }
  func.func @transform_2(%arg0: i32, %arg1: i32) -> (i32, i32) {
    %c0_i32 = arith.constant 0 : i32
    %c0_i32_0 = arith.constant 0 : i32
    %c0_i32_1 = arith.constant 0 : i32
    return %c0_i32, %c0_i32_0 : i32, i32
  }
  func.func @transform_3(%arg0: i32, %arg1: i32) -> (i32, i32) {
    %c0_i32 = arith.constant 0 : i32
    %c0_i32_0 = arith.constant 0 : i32
    %c0_i32_1 = arith.constant 0 : i32
    return %c0_i32, %c0_i32_0 : i32, i32
  }
  func.func @transform_4(%arg0: i32, %arg1: i32) -> (i32, i32) {
    %c0_i32 = arith.constant 0 : i32
    %c0_i32_0 = arith.constant 0 : i32
    %c0_i32_1 = arith.constant 0 : i32
    return %c0_i32, %c0_i32_0 : i32, i32
  }
  func.func @transform_5(%arg0: i32, %arg1: i32) -> (i32, i32) {
    %c0_i32 = arith.constant 0 : i32
    %c0_i32_0 = arith.constant 0 : i32
    %c0_i32_1 = arith.constant 0 : i32
    return %c0_i32, %c0_i32_0 : i32, i32
  }
  func.func @transform_6(%arg0: i32, %arg1: i32) -> (i32, i32, i32) {
    %c0_i32 = arith.constant 0 : i32
    %c0_i32_0 = arith.constant 0 : i32
    return %arg0, %arg1, %c0_i32 : i32, i32, i32
  }
}

</mosaic_0001>

<llo_original>
// kernel: tpu_custom_call.1
$region0: #{tpu_custom_call.1}
  #allocation0 [shape = 'u32[]', space=smem, size = 0x4, offset = 0x4, fixed_abs, tag = 'smem constant byte address 0x4 - core index']
  #allocation1 [shape = 'u32[144,128]{1,0:T(1,128)}', space=vmem, size = 0x12000, scoped, tag = 'internal scratch']
  #allocation2 [shape = 'bf16[2,256,64]{2,1,0:T(16,128)(2,1)}', space=vmem, size = 0x20000, scoped, tag = 'scratch operand']
  #allocation3 [shape = 'bf16[2,256,64]{2,1,0:T(16,128)(2,1)}', space=vmem, size = 0x20000, scoped, tag = 'scratch operand']
  #allocation4 [shape = 'bf16[128,128]{1,0:T(16,128)(2,1)}', space=vmem, size = 0x8000, scoped, tag = 'scratch operand']
  %s0 = inlined_call_operand.hbm [shape: f32[2,256,128], index: 0, kind: input, shape index: {}]
  %s1 = inlined_call_operand.hbm [shape: bf16[128,128], index: 1, kind: input, shape index: {}]
  %s2 = inlined_call_operand.hbm [shape: bf16[128,128], index: 2, kind: input, shape index: {}]
  %s3 = inlined_call_operand.hbm [shape: bf16[128,128], index: 3, kind: input, shape index: {}]
  %s4 = inlined_call_operand.hbm [shape: bf16[128,128], index: 4, kind: input, shape index: {}]
  %s5 = inlined_call_operand.vmem [shape: f32[1,128], index: 5, kind: input, shape index: {}]
  %s6 = inlined_call_operand.hbm [shape: f32[2,256,128], index: 6, kind: output, shape index: {}]
  %s7 = sld [smem:[#allocation0]]
  $region81: #{tpu_custom_call.1} parent=0
    _
  %s9 = ssub.s32 1, %s7
  %s10 = scalar_select 0, %s9, %s7
  $region1: #{tpu_custom_call.1} parent=0
    #allocation5 [shape = 'u8[262144]{0}', space=vmem, size = 0x40000, scoped, tag = 'input window, operand 0']
    #allocation6 [shape = 's32[2]{0}', space=sflag, size = 0x8, scoped, tag = 'scoped memory for tpu_custom_call.1']
    #allocation7 [shape = 's32[2]{0}', space=sflag, size = 0x8, scoped, tag = 'scoped memory for tpu_custom_call.1']
    #allocation8 [shape = 'u8[32768]{0}', space=vmem, size = 0x8000, scoped, tag = 'input window, operand 1, single buffered']
    #allocation9 [shape = 's32[1]{0}', space=sflag, size = 0x4, scoped, tag = 'scoped memory for tpu_custom_call.1']
    #allocation10 [shape = 'u8[32768]{0}', space=vmem, size = 0x8000, scoped, tag = 'input window, operand 2, single buffered']
    #allocation11 [shape = 'u8[32768]{0}', space=vmem, size = 0x8000, scoped, tag = 'input window, operand 3, single buffered']
    #allocation12 [shape = 's32[1]{0}', space=sflag, size = 0x4, scoped, tag = 'scoped memory for tpu_custom_call.1']
    #allocation13 [shape = 'u8[32768]{0}', space=vmem, size = 0x8000, scoped, tag = 'input window, operand 4, single buffered']
    #allocation14 [shape = 'u8[131072]{0}', space=vmem, size = 0x20000, scoped, tag = 'output window, operand 0']
    %11 = vsyncpa [#allocation6], 0
    %s12 = scalar_lea.sflag [#allocation6], 1
    %13 = vsyncpa %s12, 0
    %14 = vsyncpa [#allocation9], 0
    %15 = vsyncpa [#allocation12], 0
    %16 = vsyncpa [#allocation7], 0
    %s17 = scalar_lea.sflag [#allocation7], 1
    %18 = vsyncpa %s17, 0
    loop: start=0, step=1, limit=6
    $region2: #{tpu_custom_call.1} parent=1 // loop_pre_header
      _
    $region3: #{tpu_custom_call.1} parent=1 // loop_header
      %s20 = sphi 0, %s24
      %p21 = scmp.ge.s32.totalorder %s20, 6
      %s27 = sphi 0, %s39
      %s28 = sphi 0, %s35
      %s29 = sphi 0, %s27
      %s30 = sphi 0, %s28
      %s31 = sphi 0, %s29
      %s32 = sphi 0, %s30
      %s42 = sphi 0, %s44
      %s45 = sphi 0, %s42
      %s46 = sphi 0, %s45
      %s62 = sphi 0, %s46
      %s66 = sphi 0, %s66
      %s68 = sphi 0, %s66
      %s69 = sphi 0, %s68
      %s83 = sphi 0, %s69
      %s87 = sphi 0, %s87
      %s89 = sphi 0, %s87
      %s90 = sphi 0, %s89
      %s104 = sphi 0, %s90
      %s108 = sphi 0, %s108
      %s110 = sphi 0, %s108
      %s111 = sphi 0, %s110
      %s125 = sphi 0, %s111
      %s129 = sphi 0, %s129
      %s131 = sphi 0, %s129
      %s132 = sphi 0, %s131
      %s146 = sphi 0, %s132
      %s150 = sphi 0, %s150
      %s152 = sphi 0, %s150
      %s153 = sphi 0, %s152
      %s167 = sphi 0, %s153
      %s175 = sphi 0, %s177
      %s178 = sphi 0, %s175
      %s179 = sphi 0, %s178
      %s195 = sphi 0, %s179
    $region4: #{tpu_custom_call.1} parent=1 // loop_header_branch
      %23 = sbr.rel (%p21) target = $region8
    $region5: #{tpu_custom_call.1} parent=1 // loop_body
      %s25 = ssub.s32 %s20, 1
      %s26 = ssub.s32 %s20, 2
      %s33 = sadd.s32 1, %s28
      %p34 = scmp.ge.s32.totalorder %s33, 2
      %s35 = scalar_select %p34, 0, %s33
      %s36 = sadd.s32 1, %s27
      %s37 = scalar_select %p34, %s36, %s27
      %p38 = scmp.ge.s32.totalorder %s37, 2
      %s39 = scalar_select %p38, 0, %s37
      %s40 = ssub.s32 %s27, %s39
      %p41 = scmp.eq.s32.totalorder %s40, 0
      %s43 = sadd.s32 %s42, 1
      %s44 = scalar_select %p41, %s42, %s43
      %p47 = pneg %p41
      %p48 = scmp.eq.s32.totalorder %s20, 3
      %p49 = por %p47, %p48
      %p50 = scmp.ne.s32.totalorder %s42, %s45
      %p51 = scmp.eq.s32.totalorder %s20, 0
      %p52 = por %p50, %p51
      %p53 = scmp.ne.s32.totalorder %s42, %s45
      %p54 = scmp.eq.s32.totalorder %s25, 3
      %p55 = por %p53, %p54
      %p56 = scmp.ne.s32.totalorder %s45, %s46
      %p57 = scmp.eq.s32.totalorder %s25, 0
      %p58 = por %p56, %p57
      %p59 = scmp.ne.s32.totalorder %s45, %s46
      %p60 = scmp.eq.s32.totalorder %s26, 3
      %p61 = por %p59, %p60
      %p63 = scmp.ne.s32.totalorder %s46, %s62
      %p64 = scmp.eq.s32.totalorder %s26, 0
      %p65 = por %p63, %p64
      %s67 = sadd.s32 %s66, 1
      %p70 = scmp.eq.s32.totalorder %s20, 3
      %p71 = scmp.ne.s32.totalorder %s66, %s68
      %p72 = scmp.eq.s32.totalorder %s20, 0
      %p73 = por %p71, %p72
      %p74 = scmp.ne.s32.totalorder %s66, %s68
      %p75 = scmp.eq.s32.totalorder %s25, 3
      %p76 = por %p74, %p75
      %p77 = scmp.ne.s32.totalorder %s68, %s69
      %p78 = scmp.eq.s32.totalorder %s25, 0
      %p79 = por %p77, %p78
      %p80 = scmp.ne.s32.totalorder %s68, %s69
      %p81 = scmp.eq.s32.totalorder %s26, 3
      %p82 = por %p80, %p81
      %p84 = scmp.ne.s32.totalorder %s69, %s83
      %p85 = scmp.eq.s32.totalorder %s26, 0
      %p86 = por %p84, %p85
      %s88 = sadd.s32 %s87, 1
      %p91 = scmp.eq.s32.totalorder %s20, 3
      %p92 = scmp.ne.s32.totalorder %s87, %s89
      %p93 = scmp.eq.s32.totalorder %s20, 0
      %p94 = por %p92, %p93
      %p95 = scmp.ne.s32.totalorder %s87, %s89
      %p96 = scmp.eq.s32.totalorder %s25, 3
      %p97 = por %p95, %p96
      %p98 = scmp.ne.s32.totalorder %s89, %s90
      %p99 = scmp.eq.s32.totalorder %s25, 0
      %p100 = por %p98, %p99
      %p101 = scmp.ne.s32.totalorder %s89, %s90
      %p102 = scmp.eq.s32.totalorder %s26, 3
      %p103 = por %p101, %p102
      %p105 = scmp.ne.s32.totalorder %s90, %s104
      %p106 = scmp.eq.s32.totalorder %s26, 0
      %p107 = por %p105, %p106
      %s109 = sadd.s32 %s108, 1
      %p112 = scmp.eq.s32.totalorder %s20, 3
      %p113 = scmp.ne.s32.totalorder %s108, %s110
      %p114 = scmp.eq.s32.totalorder %s20, 0
      %p115 = por %p113, %p114
      %p116 = scmp.ne.s32.totalorder %s108, %s110
      %p117 = scmp.eq.s32.totalorder %s25, 3
      %p118 = por %p116, %p117
      %p119 = scmp.ne.s32.totalorder %s110, %s111
      %p120 = scmp.eq.s32.totalorder %s25, 0
      %p121 = por %p119, %p120
      %p122 = scmp.ne.s32.totalorder %s110, %s111
      %p123 = scmp.eq.s32.totalorder %s26, 3
      %p124 = por %p122, %p123
      %p126 = scmp.ne.s32.totalorder %s111, %s125
      %p127 = scmp.eq.s32.totalorder %s26, 0
      %p128 = por %p126, %p127
      %s130 = sadd.s32 %s129, 1
      %p133 = scmp.eq.s32.totalorder %s20, 3
      %p134 = scmp.ne.s32.totalorder %s129, %s131
      %p135 = scmp.eq.s32.totalorder %s20, 0
      %p136 = por %p134, %p135
      %p137 = scmp.ne.s32.totalorder %s129, %s131
      %p138 = scmp.eq.s32.totalorder %s25, 3
      %p139 = por %p137, %p138
      %p140 = scmp.ne.s32.totalorder %s131, %s132
      %p141 = scmp.eq.s32.totalorder %s25, 0
      %p142 = por %p140, %p141
      %p143 = scmp.ne.s32.totalorder %s131, %s132
      %p144 = scmp.eq.s32.totalorder %s26, 3
      %p145 = por %p143, %p144
      %p147 = scmp.ne.s32.totalorder %s132, %s146
      %p148 = scmp.eq.s32.totalorder %s26, 0
      %p149 = por %p147, %p148
      %s151 = sadd.s32 %s150, 1
      %p154 = scmp.eq.s32.totalorder %s20, 3
      %p155 = scmp.ne.s32.totalorder %s150, %s152
      %p156 = scmp.eq.s32.totalorder %s20, 0
      %p157 = por %p155, %p156
      %p158 = scmp.ne.s32.totalorder %s150, %s152
      %p159 = scmp.eq.s32.totalorder %s25, 3
      %p160 = por %p158, %p159
      %p161 = scmp.ne.s32.totalorder %s152, %s153
      %p162 = scmp.eq.s32.totalorder %s25, 0
      %p163 = por %p161, %p162
      %p164 = scmp.ne.s32.totalorder %s152, %s153
      %p165 = scmp.eq.s32.totalorder %s26, 3
      %p166 = por %p164, %p165
      %p168 = scmp.ne.s32.totalorder %s153, %s167
      %p169 = scmp.eq.s32.totalorder %s26, 0
      %p170 = por %p168, %p169
      %s171 = ssub.s32 %s27, %s39
      %s172 = ssub.s32 %s28, %s35
      %s173 = sor.u32 %s171, %s172
      %p174 = scmp.eq.s32.totalorder %s173, 0
      %s176 = sadd.s32 %s175, 1
      %s177 = scalar_select %p174, %s175, %s176
      %p180 = pneg %p174
      %p181 = scmp.eq.s32.totalorder %s20, 3
      %p182 = por %p180, %p181
      %p183 = scmp.ne.s32.totalorder %s175, %s178
      %p184 = scmp.eq.s32.totalorder %s20, 0
      %p185 = por %p183, %p184
      %p186 = scmp.ne.s32.totalorder %s175, %s178
      %p187 = scmp.eq.s32.totalorder %s25, 3
      %p188 = por %p186, %p187
      %p189 = scmp.ne.s32.totalorder %s178, %s179
      %p190 = scmp.eq.s32.totalorder %s25, 0
      %p191 = por %p189, %p190
      %p192 = scmp.ne.s32.totalorder %s178, %s179
      %p193 = scmp.eq.s32.totalorder %s26, 3
      %p194 = por %p192, %p193
      %p196 = scmp.ne.s32.totalorder %s179, %s195
      %p197 = scmp.eq.s32.totalorder %s26, 0
      %p198 = por %p196, %p197
      %p199 = scmp.le.s32.totalorder 1, %s20
      %p200 = scmp.lt.s32.totalorder %s20, 5
      %p201 = pnand %p199, %p200
      %p202 = pneg %p201
      // Predicated region
      $region9: #{tpu_custom_call.1} parent=5 // pred_check
        _
      $region10: #{tpu_custom_call.1} parent=5 // pred_check_branch
        %204 = sbr.rel (%p201) target = $region12
      $region11: #{tpu_custom_call.1} parent=5 // pred_region
        %s205 = ssub.s32 %s20, 1
        // Predicated region
        $region13: #{tpu_custom_call.1} parent=11 // pred_check
          %p206 = pneg %p79
        $region14: #{tpu_custom_call.1} parent=11 // pred_check_branch
          %208 = sbr.rel (%p206) target = $region16
        $region15: #{tpu_custom_call.1} parent=11 // pred_region
          %s210 = ssub.s32 1024, 1024
          %211 = vsyncadd [#allocation9], %s210
          %s212 = sshll.u32 [#allocation8], 4
          %s213 = int_to_ptr.vmem [resolvable:$true] %s212
          %218 = dma.hbm_to_vmem [thread:$0]  %s1, 1024, %s213, [#allocation9], 64, 64, 4
        $region16: #{tpu_custom_call.1} parent=11 // pred_fallthru
          _
        // Predicated region
        $region17: #{tpu_custom_call.1} parent=11 // pred_check
          %p219 = pneg %p100
        $region18: #{tpu_custom_call.1} parent=11 // pred_check_branch
          %221 = sbr.rel (%p219) target = $region20
        $region19: #{tpu_custom_call.1} parent=11 // pred_region
          %s223 = ssub.s32 1024, 1024
          %224 = vsyncadd [#allocation9], %s223
          %s225 = sshll.u32 [#allocation10], 4
          %s226 = int_to_ptr.vmem [resolvable:$true] %s225
          %231 = dma.hbm_to_vmem [thread:$0]  %s2, 1024, %s226, [#allocation9], 64, 64, 4
        $region20: #{tpu_custom_call.1} parent=11 // pred_fallthru
          _
        // Predicated region
        $region21: #{tpu_custom_call.1} parent=11 // pred_check
          %p232 = pneg %p121
        $region22: #{tpu_custom_call.1} parent=11 // pred_check_branch
          %234 = sbr.rel (%p232) target = $region24
        $region23: #{tpu_custom_call.1} parent=11 // pred_region
          %s236 = ssub.s32 1024, 1024
          %237 = vsyncadd [#allocation12], %s236
          %s238 = sshll.u32 [#allocation11], 4
          %s239 = int_to_ptr.vmem [resolvable:$true] %s238
          %244 = dma.hbm_to_vmem [thread:$0]  %s3, 1024, %s239, [#allocation12], 64, 64, 4
        $region24: #{tpu_custom_call.1} parent=11 // pred_fallthru
          _
        // Predicated region
        $region25: #{tpu_custom_call.1} parent=11 // pred_check
          %p245 = pneg %p142
        $region26: #{tpu_custom_call.1} parent=11 // pred_check_branch
          %247 = sbr.rel (%p245) target = $region28
        $region27: #{tpu_custom_call.1} parent=11 // pred_region
          %s249 = ssub.s32 1024, 1024
          %250 = vsyncadd [#allocation12], %s249
          %s251 = sshll.u32 [#allocation13], 4
          %s252 = int_to_ptr.vmem [resolvable:$true] %s251
          %257 = dma.hbm_to_vmem [thread:$0]  %s4, 1024, %s252, [#allocation12], 64, 64, 4
        $region28: #{tpu_custom_call.1} parent=11 // pred_fallthru
          _
        // Predicated region
        $region29: #{tpu_custom_call.1} parent=11 // pred_check
          %p258 = pneg %p163
        $region30: #{tpu_custom_call.1} parent=11 // pred_check_branch
          %260 = sbr.rel (%p258) target = $region32
        $region31: #{tpu_custom_call.1} parent=11 // pred_region
          _
        $region32: #{tpu_custom_call.1} parent=11 // pred_fallthru
          _
      $region12: #{tpu_custom_call.1} parent=5 // pred_fallthru
        _
      %p261 = scmp.lt.s32.totalorder %s20, 4
      // Predicated region
      $region33: #{tpu_custom_call.1} parent=5 // pred_check
        %p262 = pneg %p261
      $region34: #{tpu_custom_call.1} parent=5 // pred_check_branch
        %264 = sbr.rel (%p262) target = $region36
      $region35: #{tpu_custom_call.1} parent=5 // pred_region
        // Predicated region
        $region37: #{tpu_custom_call.1} parent=35 // pred_check
          %p265 = pneg %p52
        $region38: #{tpu_custom_call.1} parent=35 // pred_check_branch
          %267 = sbr.rel (%p265) target = $region40
        $region39: #{tpu_custom_call.1} parent=35 // pred_region
          %s268 = sand.u32 %s42, 1
          %s269 = scalar_lea.sflag [#allocation6], %s268
          %s270 = sand.u32 %s42, 1
          %s271 = smul.addr %s270, 256
          %s272 = scalar_lea.vmem [#allocation5], %s271
          %s274 = ssub.s32 4096, 4096
          %275 = vsyncadd %s269, %s274
          %s276 = smul.addr %s27, 32
          %s277 = smul.addr %s276, 128
          %s278 = scalar_lea.hbm %s0, %s277
          %s279 = sshll.u32 %s272, 4
          %s280 = int_to_ptr.vmem [resolvable:$true] %s279
          %285 = dma.hbm_to_vmem [thread:$0]  %s278, 4096, %s280, %s269, 128, 128, 8
        $region40: #{tpu_custom_call.1} parent=35 // pred_fallthru
          _
      $region36: #{tpu_custom_call.1} parent=5 // pred_fallthru
        _
      %p286 = scmp.le.s32.totalorder 1, %s20
      %p287 = scmp.lt.s32.totalorder %s20, 5
      %p288 = pnand %p286, %p287
      %p289 = pneg %p288
      // Predicated region
      $region41: #{tpu_custom_call.1} parent=5 // pred_check
        _
      $region42: #{tpu_custom_call.1} parent=5 // pred_check_branch
        %291 = sbr.rel (%p288) target = $region44
      $region43: #{tpu_custom_call.1} parent=5 // pred_region
        %s292 = ssub.s32 %s20, 1
        %s293 = sand.u32 %s45, 1
        %s294 = scalar_lea.sflag [#allocation6], %s293
        %s295 = sand.u32 %s45, 1
        %s296 = smul.addr %s295, 256
        %s297 = scalar_lea.vmem [#allocation5], %s296
        // Predicated region
        $region45: #{tpu_custom_call.1} parent=43 // pred_check
          %p298 = pneg %p58
        $region46: #{tpu_custom_call.1} parent=43 // pred_check_branch
          %300 = sbr.rel (%p298) target = $region48
        $region47: #{tpu_custom_call.1} parent=43 // pred_region
          %301 = dma.done %s294, 4096
        $region48: #{tpu_custom_call.1} parent=43 // pred_fallthru
          _
        // Predicated region
        $region49: #{tpu_custom_call.1} parent=43 // pred_check
          %p302 = pneg %p79
        $region50: #{tpu_custom_call.1} parent=43 // pred_check_branch
          %304 = sbr.rel (%p302) target = $region52
        $region51: #{tpu_custom_call.1} parent=43 // pred_region
          %305 = dma.done [#allocation9], 1024
        $region52: #{tpu_custom_call.1} parent=43 // pred_fallthru
          _
        // Predicated region
        $region53: #{tpu_custom_call.1} parent=43 // pred_check
          %p306 = pneg %p100
        $region54: #{tpu_custom_call.1} parent=43 // pred_check_branch
          %308 = sbr.rel (%p306) target = $region56
        $region55: #{tpu_custom_call.1} parent=43 // pred_region
          %309 = dma.done [#allocation9], 1024
        $region56: #{tpu_custom_call.1} parent=43 // pred_fallthru
          _
        // Predicated region
        $region57: #{tpu_custom_call.1} parent=43 // pred_check
          %p310 = pneg %p121
        $region58: #{tpu_custom_call.1} parent=43 // pred_check_branch
          %312 = sbr.rel (%p310) target = $region60
        $region59: #{tpu_custom_call.1} parent=43 // pred_region
          %313 = dma.done [#allocation12], 1024
        $region60: #{tpu_custom_call.1} parent=43 // pred_fallthru
          _
        // Predicated region
        $region61: #{tpu_custom_call.1} parent=43 // pred_check
          %p314 = pneg %p142
        $region62: #{tpu_custom_call.1} parent=43 // pred_check_branch
          %316 = sbr.rel (%p314) target = $region64
        $region63: #{tpu_custom_call.1} parent=43 // pred_region
          %317 = dma.done [#allocation12], 1024
        $region64: #{tpu_custom_call.1} parent=43 // pred_fallthru
          _
        %s318 = sand.u32 %s45, 1
        %s319 = scalar_lea.sflag [#allocation6], %s318
        %s320 = sand.u32 %s45, 1
        %s321 = smul.addr %s320, 256
        %s322 = scalar_lea.vmem [#allocation5], %s321
        %p323 = pneg %p58
        %p324 = pneg %p55
        %p325 = pneg %p79
        %p326 = pneg %p76
        %p327 = pneg %p100
        %p328 = pneg %p97
        %p329 = pneg %p121
        %p330 = pneg %p118
        %p331 = pneg %p142
        %p332 = pneg %p139
        %p333 = pneg %p163
        %p334 = pneg %p160
        %p335 = pneg %p191
        %p336 = pneg %p188
        %s337 = sand.u32 %s178, 1
        %s338 = scalar_lea.sflag [#allocation7], %s337
        %s339 = sand.u32 %s178, 1
        %s340 = smul.addr %s339, 128
        %s341 = scalar_lea.vmem [#allocation14], %s340
        %s342 = smul.u32 16, %s30
        %p344 = scmp.eq.s32.totalorder %s30, 0
        // Predicated region
        $region65: #{tpu_custom_call.1} parent=43 // pred_check
          %p345 = pneg %p344
        $region66: #{tpu_custom_call.1} parent=43 // pred_check_branch
          %347 = sbr.rel (%p345) target = $region68
        $region67: #{tpu_custom_call.1} parent=43 // pred_region
          %v348 = vld [vmem:[%s297] sm:$0xff]
          %v349 = vld [vmem:[%s297 + $0x8] sm:$0xff]
          %v350 = vld [vmem:[%s297 + $0x10] sm:$0xff]
          %v351 = vld [vmem:[%s297 + $0x18] sm:$0xff]
          %v352 = vld [vmem:[%s297 + $0x20] sm:$0xff]
          %v353 = vld [vmem:[%s297 + $0x28] sm:$0xff]
          %v354 = vld [vmem:[%s297 + $0x30] sm:$0xff]
          %v355 = vld [vmem:[%s297 + $0x38] sm:$0xff]
          %v356 = vld [vmem:[%s297 + $0x40] sm:$0xff]
          %v357 = vld [vmem:[%s297 + $0x48] sm:$0xff]
          %v358 = vld [vmem:[%s297 + $0x50] sm:$0xff]
          %v359 = vld [vmem:[%s297 + $0x58] sm:$0xff]
          %v360 = vld [vmem:[%s297 + $0x60] sm:$0xff]
          %v361 = vld [vmem:[%s297 + $0x68] sm:$0xff]
          %v362 = vld [vmem:[%s297 + $0x70] sm:$0xff]
          %v363 = vld [vmem:[%s297 + $0x78] sm:$0xff]
          %v364 = vld [vmem:[%s297 + $0x80] sm:$0xff]
          %v365 = vld [vmem:[%s297 + $0x88] sm:$0xff]
          %v366 = vld [vmem:[%s297 + $0x90] sm:$0xff]
          %v367 = vld [vmem:[%s297 + $0x98] sm:$0xff]
          %v368 = vld [vmem:[%s297 + $0xa0] sm:$0xff]
          %v369 = vld [vmem:[%s297 + $0xa8] sm:$0xff]
          %v370 = vld [vmem:[%s297 + $0xb0] sm:$0xff]
          %v371 = vld [vmem:[%s297 + $0xb8] sm:$0xff]
          %v372 = vld [vmem:[%s297 + $0xc0] sm:$0xff]
          %v373 = vld [vmem:[%s297 + $0xc8] sm:$0xff]
          %v374 = vld [vmem:[%s297 + $0xd0] sm:$0xff]
          %v375 = vld [vmem:[%s297 + $0xd8] sm:$0xff]
          %v376 = vld [vmem:[%s297 + $0xe0] sm:$0xff]
          %v377 = vld [vmem:[%s297 + $0xe8] sm:$0xff]
          %v378 = vld [vmem:[%s297 + $0xf0] sm:$0xff]
          %v379 = vld [vmem:[%s297 + $0xf8] sm:$0xff]
          %v380 = vpack.c.bf16 %v349, %v348
          %v381 = vpack.c.bf16 %v351, %v350
          %v382 = vpack.c.bf16 %v353, %v352
          %v383 = vpack.c.bf16 %v355, %v354
          %v384 = vpack.c.bf16 %v357, %v356
          %v385 = vpack.c.bf16 %v359, %v358
          %v386 = vpack.c.bf16 %v361, %v360
          %v387 = vpack.c.bf16 %v363, %v362
          %v388 = vpack.c.bf16 %v365, %v364
          %v389 = vpack.c.bf16 %v367, %v366
          %v390 = vpack.c.bf16 %v369, %v368
          %v391 = vpack.c.bf16 %v371, %v370
          %v392 = vpack.c.bf16 %v373, %v372
          %v393 = vpack.c.bf16 %v375, %v374
          %v394 = vpack.c.bf16 %v377, %v376
          %v395 = vpack.c.bf16 %v379, %v378
          %v396 = vld [vmem:[#allocation10] sm:$0xf]
          %v397 = vld [vmem:[#allocation10 + $0x4] sm:$0xf]
          %v398 = vld [vmem:[#allocation10 + $0x8] sm:$0xf]
          %v399 = vld [vmem:[#allocation10 + $0xc] sm:$0xf]
          %v400 = vld [vmem:[#allocation10 + $0x10] sm:$0xf]
          %v401 = vld [vmem:[#allocation10 + $0x14] sm:$0xf]
          %v402 = vld [vmem:[#allocation10 + $0x18] sm:$0xf]
          %v403 = vld [vmem:[#allocation10 + $0x1c] sm:$0xf]
          %v404 = vld [vmem:[#allocation10 + $0x20] sm:$0xf]
          %v405 = vld [vmem:[#allocation10 + $0x24] sm:$0xf]
          %v406 = vld [vmem:[#allocation10 + $0x28] sm:$0xf]
          %v407 = vld [vmem:[#allocation10 + $0x2c] sm:$0xf]
          %v408 = vld [vmem:[#allocation10 + $0x30] sm:$0xf]
          %v409 = vld [vmem:[#allocation10 + $0x34] sm:$0xf]
          %v410 = vld [vmem:[#allocation10 + $0x38] sm:$0xf]
          %v411 = vld [vmem:[#allocation10 + $0x3c] sm:$0xf]
          %v428 = vunpack.c.l.b16 %v396
          %v429 = vunpack.c.l.b16 %v397
          %v430 = vunpack.c.l.b16 %v398
          %v431 = vunpack.c.l.b16 %v399
          %v432 = vunpack.c.l.b16 %v400
          %v433 = vunpack.c.l.b16 %v401
          %v434 = vunpack.c.l.b16 %v402
          %v435 = vunpack.c.l.b16 %v403
          %v436 = vunpack.c.l.b16 %v404
          %v437 = vunpack.c.l.b16 %v405
          %v438 = vunpack.c.l.b16 %v406
          %v439 = vunpack.c.l.b16 %v407
          %v440 = vunpack.c.l.b16 %v408
          %v441 = vunpack.c.l.b16 %v409
          %v442 = vunpack.c.l.b16 %v410
          %v443 = vunpack.c.l.b16 %v411
          %v444 = vpack.c.b16 %v429, %v428
          %v445 = vpack.c.b16 %v431, %v430
          %v446 = vpack.c.b16 %v433, %v432
          %v447 = vpack.c.b16 %v435, %v434
          %v448 = vpack.c.b16 %v437, %v436
          %v449 = vpack.c.b16 %v439, %v438
          %v450 = vpack.c.b16 %v441, %v440
          %v451 = vpack.c.b16 %v443, %v442
          %460 = vmatprep.subr.bf16.mxu0 0
          %461 = vmatpush1.bf16.msra.mxu0 %v444
          %462 = vmatprep.subr.bf16.mxu0 0
          %463 = vmatpush1.bf16.msra.mxu0 %v445
          %464 = vmatprep.subr.bf16.mxu0 0
          %465 = vmatpush1.bf16.msra.mxu0 %v446
          %466 = vmatprep.subr.bf16.mxu0 0
          %467 = vmatpush1.bf16.msra.mxu0 %v447
          %468 = vmatprep.subr.bf16.mxu0 0
          %469 = vmatpush1.bf16.msra.mxu0 %v448
          %470 = vmatprep.subr.bf16.mxu0 0
          %471 = vmatpush1.bf16.msra.mxu0 %v449
          %472 = vmatprep.subr.bf16.mxu0 0
          %473 = vmatpush1.bf16.msra.mxu0 %v450
          %474 = vmatprep.subr.bf16.mxu0 0
          %475 = vmatpush1.bf16.msra.mxu0 %v451
          %476 = vmatprep.subr.bf16.mxu0 0
          %477 = vmatpush1.bf16.msra.mxu0 0
          %478 = vmatprep.subr.bf16.mxu0 0
          %479 = vmatpush1.bf16.msra.mxu0 0
          %480 = vmatprep.subr.bf16.mxu0 0
          %481 = vmatpush1.bf16.msra.mxu0 0
          %482 = vmatprep.subr.bf16.mxu0 0
          %483 = vmatpush1.bf16.msra.mxu0 0
          %484 = vmatprep.subr.bf16.mxu0 0
          %485 = vmatpush1.bf16.msra.mxu0 0
          %486 = vmatprep.subr.bf16.mxu0 0
          %487 = vmatpush1.bf16.msra.mxu0 0
          %488 = vmatprep.subr.bf16.mxu0 0
          %489 = vmatpush1.bf16.msra.mxu0 0
          %490 = vmatprep.subr.bf16.mxu0 0
          %491 = vmatpush1.bf16.msra.mxu0 0
          %492 = vmatprep.mubr.bf16.mxu0 0
          %493 = vmatmul.mubr.bf16.gmra.mrb[0].mxu0 %v380
          %v494 = vpop.f32.mrb[0].mxu0
          %v495 = vadd.f32 0.0, %v494
          %v496 = vpop.f32.mrb[0].mxu0
          %v497 = vpop.f32.mrb[0].mxu0
          %v498 = vadd.f32 0.0, %v497
          %v499 = vpop.f32.mrb[0].mxu0
          %500 = vmatprep.mubr.bf16.mxu0 0
          %501 = vmatmul.mubr.bf16.gmra.mrb[0].mxu0 %v381
          %v502 = vpop.f32.mrb[0].mxu0
          %v503 = vadd.f32 0.0, %v502
          %v504 = vpop.f32.mrb[0].mxu0
          %v505 = vpop.f32.mrb[0].mxu0
          %v506 = vadd.f32 0.0, %v505
          %v507 = vpop.f32.mrb[0].mxu0
          %508 = vmatprep.mubr.bf16.mxu0 0
          %509 = vmatmul.mubr.bf16.gmra.mrb[0].mxu0 %v382
          %v510 = vpop.f32.mrb[0].mxu0
          %v511 = vadd.f32 0.0, %v510
          %v512 = vpop.f32.mrb[0].mxu0
          %v513 = vpop.f32.mrb[0].mxu0
          %v514 = vadd.f32 0.0, %v513
          %v515 = vpop.f32.mrb[0].mxu0
          %516 = vmatprep.mubr.bf16.mxu0 0
          %517 = vmatmul.mubr.bf16.gmra.mrb[0].mxu0 %v383
          %v518 = vpop.f32.mrb[0].mxu0
          %v519 = vadd.f32 0.0, %v518
          %v520 = vpop.f32.mrb[0].mxu0
          %v521 = vpop.f32.mrb[0].mxu0
          %v522 = vadd.f32 0.0, %v521
          %v523 = vpop.f32.mrb[0].mxu0
          %524 = vmatprep.mubr.bf16.mxu0 0
          %525 = vmatmul.mubr.bf16.gmra.mrb[0].mxu0 %v384
          %v526 = vpop.f32.mrb[0].mxu0
          %v527 = vadd.f32 0.0, %v526
          %v528 = vpop.f32.mrb[0].mxu0
          %v529 = vpop.f32.mrb[0].mxu0
          %v530 = vadd.f32 0.0, %v529
          %v531 = vpop.f32.mrb[0].mxu0
          %532 = vmatprep.mubr.bf16.mxu0 0
          %533 = vmatmul.mubr.bf16.gmra.mrb[0].mxu0 %v385
          %v534 = vpop.f32.mrb[0].mxu0
          %v535 = vadd.f32 0.0, %v534
          %v536 = vpop.f32.mrb[0].mxu0
          %v537 = vpop.f32.mrb[0].mxu0
          %v538 = vadd.f32 0.0, %v537
          %v539 = vpop.f32.mrb[0].mxu0
          %540 = vmatprep.mubr.bf16.mxu0 0
          %541 = vmatmul.mubr.bf16.gmra.mrb[0].mxu0 %v386
          %v542 = vpop.f32.mrb[0].mxu0
          %v543 = vadd.f32 0.0, %v542
          %v544 = vpop.f32.mrb[0].mxu0
          %v545 = vpop.f32.mrb[0].mxu0
          %v546 = vadd.f32 0.0, %v545
          %v547 = vpop.f32.mrb[0].mxu0
          %548 = vmatprep.mubr.bf16.mxu0 0
          %549 = vmatmul.mubr.bf16.gmra.mrb[0].mxu0 %v387
          %v550 = vpop.f32.mrb[0].mxu0
          %v551 = vadd.f32 0.0, %v550
          %v552 = vpop.f32.mrb[0].mxu0
          %v553 = vpop.f32.mrb[0].mxu0
          %v554 = vadd.f32 0.0, %v553
          %v555 = vpop.f32.mrb[0].mxu0
          %556 = vmatprep.mubr.bf16.mxu0 0
          %557 = vmatmul.mubr.bf16.gmra.mrb[0].mxu0 %v388
          %v558 = vpop.f32.mrb[0].mxu0
          %v559 = vadd.f32 0.0, %v558
          %v560 = vpop.f32.mrb[0].mxu0
          %v561 = vpop.f32.mrb[0].mxu0
          %v562 = vadd.f32 0.0, %v561
          %v563 = vpop.f32.mrb[0].mxu0
          %564 = vmatprep.mubr.bf16.mxu0 0
          %565 = vmatmul.mubr.bf16.gmra.mrb[0].mxu0 %v389
          %v566 = vpop.f32.mrb[0].mxu0
          %v567 = vadd.f32 0.0, %v566
          %v568 = vpop.f32.mrb[0].mxu0
          %v569 = vpop.f32.mrb[0].mxu0
          %v570 = vadd.f32 0.0, %v569
          %v571 = vpop.f32.mrb[0].mxu0
          %572 = vmatprep.mubr.bf16.mxu0 0
          %573 = vmatmul.mubr.bf16.gmra.mrb[0].mxu0 %v390
          %v574 = vpop.f32.mrb[0].mxu0
          %v575 = vadd.f32 0.0, %v574
          %v576 = vpop.f32.mrb[0].mxu0
          %v577 = vpop.f32.mrb[0].mxu0
          %v578 = vadd.f32 0.0, %v577
          %v579 = vpop.f32.mrb[0].mxu0
          %580 = vmatprep.mubr.bf16.mxu0 0
          %581 = vmatmul.mubr.bf16.gmra.mrb[0].mxu0 %v391
          %v582 = vpop.f32.mrb[0].mxu0
          %v583 = vadd.f32 0.0, %v582
          %v584 = vpop.f32.mrb[0].mxu0
          %v585 = vpop.f32.mrb[0].mxu0
          %v586 = vadd.f32 0.0, %v585
          %v587 = vpop.f32.mrb[0].mxu0
          %588 = vmatprep.mubr.bf16.mxu0 0
          %589 = vmatmul.mubr.bf16.gmra.mrb[0].mxu0 %v392
          %v590 = vpop.f32.mrb[0].mxu0
          %v591 = vadd.f32 0.0, %v590
          %v592 = vpop.f32.mrb[0].mxu0
          %v593 = vpop.f32.mrb[0].mxu0
          %v594 = vadd.f32 0.0, %v593
          %v595 = vpop.f32.mrb[0].mxu0
          %596 = vmatprep.mubr.bf16.mxu0 0
          %597 = vmatmul.mubr.bf16.gmra.mrb[0].mxu0 %v393
          %v598 = vpop.f32.mrb[0].mxu0
          %v599 = vadd.f32 0.0, %v598
          %v600 = vpop.f32.mrb[0].mxu0
          %v601 = vpop.f32.mrb[0].mxu0
          %v602 = vadd.f32 0.0, %v601
          %v603 = vpop.f32.mrb[0].mxu0
          %604 = vmatprep.mubr.bf16.mxu0 0
          %605 = vmatmul.mubr.bf16.gmra.mrb[0].mxu0 %v394
          %v606 = vpop.f32.mrb[0].mxu0
          %v607 = vadd.f32 0.0, %v606
          %v608 = vpop.f32.mrb[0].mxu0
          %v609 = vpop.f32.mrb[0].mxu0
          %v610 = vadd.f32 0.0, %v609
          %v611 = vpop.f32.mrb[0].mxu0
          %612 = vmatprep.mubr.bf16.mxu0 0
          %613 = vmatmul.mubr.bf16.gmra.mrb[0].mxu0 %v395
          %v614 = vpop.f32.mrb[0].mxu0
          %v615 = vadd.f32 0.0, %v614
          %v616 = vpop.f32.mrb[0].mxu0
          %v617 = vpop.f32.mrb[0].mxu0
          %v618 = vadd.f32 0.0, %v617
          %v619 = vpop.f32.mrb[0].mxu0
          %620 = vdwg.mxu0
          %v621 = vpack.c.bf16 %v498, %v495
          %v622 = vpack.c.bf16 %v506, %v503
          %v623 = vpack.c.bf16 %v514, %v511
          %v624 = vpack.c.bf16 %v522, %v519
          %v625 = vpack.c.bf16 %v530, %v527
          %v626 = vpack.c.bf16 %v538, %v535
          %v627 = vpack.c.bf16 %v546, %v543
          %v628 = vpack.c.bf16 %v554, %v551
          %v629 = vpack.c.bf16 %v562, %v559
          %v630 = vpack.c.bf16 %v570, %v567
          %v631 = vpack.c.bf16 %v578, %v575
          %v632 = vpack.c.bf16 %v586, %v583
          %v633 = vpack.c.bf16 %v594, %v591
          %v634 = vpack.c.bf16 %v602, %v599
          %v635 = vpack.c.bf16 %v610, %v607
          %v636 = vpack.c.bf16 %v618, %v615
          %v637 = vld [vmem:[#allocation11] sm:$0xf]
          %v638 = vld [vmem:[#allocation11 + $0x4] sm:$0xf]
          %v639 = vld [vmem:[#allocation11 + $0x8] sm:$0xf]
          %v640 = vld [vmem:[#allocation11 + $0xc] sm:$0xf]
          %v641 = vld [vmem:[#allocation11 + $0x10] sm:$0xf]
          %v642 = vld [vmem:[#allocation11 + $0x14] sm:$0xf]
          %v643 = vld [vmem:[#allocation11 + $0x18] sm:$0xf]
          %v644 = vld [vmem:[#allocation11 + $0x1c] sm:$0xf]
          %v645 = vld [vmem:[#allocation11 + $0x20] sm:$0xf]
          %v646 = vld [vmem:[#allocation11 + $0x24] sm:$0xf]
          %v647 = vld [vmem:[#allocation11 + $0x28] sm:$0xf]
          %v648 = vld [vmem:[#allocation11 + $0x2c] sm:$0xf]
          %v649 = vld [vmem:[#allocation11 + $0x30] sm:$0xf]
          %v650 = vld [vmem:[#allocation11 + $0x34] sm:$0xf]
          %v651 = vld [vmem:[#allocation11 + $0x38] sm:$0xf]
          %v652 = vld [vmem:[#allocation11 + $0x3c] sm:$0xf]
          %v669 = vunpack.c.l.b16 %v637
          %v670 = vunpack.c.l.b16 %v638
          %v671 = vunpack.c.l.b16 %v639
          %v672 = vunpack.c.l.b16 %v640
          %v673 = vunpack.c.l.b16 %v641
          %v674 = vunpack.c.l.b16 %v642
          %v675 = vunpack.c.l.b16 %v643
          %v676 = vunpack.c.l.b16 %v644
          %v677 = vunpack.c.l.b16 %v645
          %v678 = vunpack.c.l.b16 %v646
          %v679 = vunpack.c.l.b16 %v647
          %v680 = vunpack.c.l.b16 %v648
          %v681 = vunpack.c.l.b16 %v649
          %v682 = vunpack.c.l.b16 %v650
          %v683 = vunpack.c.l.b16 %v651
          %v684 = vunpack.c.l.b16 %v652
          %v685 = vpack.c.b16 %v670, %v669
          %v686 = vpack.c.b16 %v672, %v671
          %v687 = vpack.c.b16 %v674, %v673
          %v688 = vpack.c.b16 %v676, %v675
          %v689 = vpack.c.b16 %v678, %v677
          %v690 = vpack.c.b16 %v680, %v679
          %v691 = vpack.c.b16 %v682, %v681
          %v692 = vpack.c.b16 %v684, %v683
          %701 = vmatprep.subr.bf16.mxu0 0
          %702 = vmatpush1.bf16.msra.mxu0 %v685
          %703 = vmatprep.subr.bf16.mxu0 0
          %704 = vmatpush1.bf16.msra.mxu0 %v686
          %705 = vmatprep.subr.bf16.mxu0 0
          %706 = vmatpush1.bf16.msra.mxu0 %v687
          %707 = vmatprep.subr.bf16.mxu0 0
          %708 = vmatpush1.bf16.msra.mxu0 %v688
          %709 = vmatprep.subr.bf16.mxu0 0
          %710 = vmatpush1.bf16.msra.mxu0 %v689
          %711 = vmatprep.subr.bf16.mxu0 0
          %712 = vmatpush1.bf16.msra.mxu0 %v690
          %713 = vmatprep.subr.bf16.mxu0 0
          %714 = vmatpush1.bf16.msra.mxu0 %v691
          %715 = vmatprep.subr.bf16.mxu0 0
          %716 = vmatpush1.bf16.msra.mxu0 %v692
          %717 = vmatprep.subr.bf16.mxu0 0
          %718 = vmatpush1.bf16.msra.mxu0 0
          %719 = vmatprep.subr.bf16.mxu0 0
          %720 = vmatpush1.bf16.msra.mxu0 0
          %721 = vmatprep.subr.bf16.mxu0 0
          %722 = vmatpush1.bf16.msra.mxu0 0
          %723 = vmatprep.subr.bf16.mxu0 0
          %724 = vmatpush1.bf16.msra.mxu0 0
          %725 = vmatprep.subr.bf16.mxu0 0
          %726 = vmatpush1.bf16.msra.mxu0 0
          %727 = vmatprep.subr.bf16.mxu0 0
          %728 = vmatpush1.bf16.msra.mxu0 0
          %729 = vmatprep.subr.bf16.mxu0 0
          %730 = vmatpush1.bf16.msra.mxu0 0
          %731 = vmatprep.subr.bf16.mxu0 0
          %732 = vmatpush1.bf16.msra.mxu0 0
          %733 = vmatprep.mubr.bf16.mxu0 0
          %734 = vmatmul.mubr.bf16.gmra.mrb[0].mxu0 %v380
          %v735 = vpop.f32.mrb[0].mxu0
          %v736 = vadd.f32 0.0, %v735
          %v737 = vpop.f32.mrb[0].mxu0
          %v738 = vpop.f32.mrb[0].mxu0
          %v739 = vadd.f32 0.0, %v738
          %v740 = vpop.f32.mrb[0].mxu0
          %741 = vmatprep.mubr.bf16.mxu0 0
          %742 = vmatmul.mubr.bf16.gmra.mrb[0].mxu0 %v381
          %v743 = vpop.f32.mrb[0].mxu0
          %v744 = vadd.f32 0.0, %v743
          %v745 = vpop.f32.mrb[0].mxu0
          %v746 = vpop.f32.mrb[0].mxu0
          %v747 = vadd.f32 0.0, %v746
          %v748 = vpop.f32.mrb[0].mxu0
          %749 = vmatprep.mubr.bf16.mxu0 0
          %750 = vmatmul.mubr.bf16.gmra.mrb[0].mxu0 %v382
          %v751 = vpop.f32.mrb[0].mxu0
          %v752 = vadd.f32 0.0, %v751
          %v753 = vpop.f32.mrb[0].mxu0
          %v754 = vpop.f32.mrb[0].mxu0
          %v755 = vadd.f32 0.0, %v754
          %v756 = vpop.f32.mrb[0].mxu0
          %757 = vmatprep.mubr.bf16.mxu0 0
          %758 = vmatmul.mubr.bf16.gmra.mrb[0].mxu0 %v383
          %v759 = vpop.f32.mrb[0].mxu0
          %v760 = vadd.f32 0.0, %v759
          %v761 = vpop.f32.mrb[0].mxu0
          %v762 = vpop.f32.mrb[0].mxu0
          %v763 = vadd.f32 0.0, %v762
          %v764 = vpop.f32.mrb[0].mxu0
          %765 = vmatprep.mubr.bf16.mxu0 0
          %766 = vmatmul.mubr.bf16.gmra.mrb[0].mxu0 %v384
          %v767 = vpop.f32.mrb[0].mxu0
          %v768 = vadd.f32 0.0, %v767
          %v769 = vpop.f32.mrb[0].mxu0
          %v770 = vpop.f32.mrb[0].mxu0
          %v771 = vadd.f32 0.0, %v770
          %v772 = vpop.f32.mrb[0].mxu0
          %773 = vmatprep.mubr.bf16.mxu0 0
          %774 = vmatmul.mubr.bf16.gmra.mrb[0].mxu0 %v385
          %v775 = vpop.f32.mrb[0].mxu0
          %v776 = vadd.f32 0.0, %v775
          %v777 = vpop.f32.mrb[0].mxu0
          %v778 = vpop.f32.mrb[0].mxu0
          %v779 = vadd.f32 0.0, %v778
          %v780 = vpop.f32.mrb[0].mxu0
          %781 = vmatprep.mubr.bf16.mxu0 0
          %782 = vmatmul.mubr.bf16.gmra.mrb[0].mxu0 %v386
          %v783 = vpop.f32.mrb[0].mxu0
          %v784 = vadd.f32 0.0, %v783
          %v785 = vpop.f32.mrb[0].mxu0
          %v786 = vpop.f32.mrb[0].mxu0
          %v787 = vadd.f32 0.0, %v786
          %v788 = vpop.f32.mrb[0].mxu0
          %789 = vmatprep.mubr.bf16.mxu0 0
          %790 = vmatmul.mubr.bf16.gmra.mrb[0].mxu0 %v387
          %v791 = vpop.f32.mrb[0].mxu0
          %v792 = vadd.f32 0.0, %v791
          %v793 = vpop.f32.mrb[0].mxu0
          %v794 = vpop.f32.mrb[0].mxu0
          %v795 = vadd.f32 0.0, %v794
          %v796 = vpop.f32.mrb[0].mxu0
          %797 = vmatprep.mubr.bf16.mxu0 0
          %798 = vmatmul.mubr.bf16.gmra.mrb[0].mxu0 %v388
          %v799 = vpop.f32.mrb[0].mxu0
          %v800 = vadd.f32 0.0, %v799
          %v801 = vpop.f32.mrb[0].mxu0
          %v802 = vpop.f32.mrb[0].mxu0
          %v803 = vadd.f32 0.0, %v802
          %v804 = vpop.f32.mrb[0].mxu0
          %805 = vmatprep.mubr.bf16.mxu0 0
          %806 = vmatmul.mubr.bf16.gmra.mrb[0].mxu0 %v389
          %v807 = vpop.f32.mrb[0].mxu0
          %v808 = vadd.f32 0.0, %v807
          %v809 = vpop.f32.mrb[0].mxu0
          %v810 = vpop.f32.mrb[0].mxu0
          %v811 = vadd.f32 0.0, %v810
          %v812 = vpop.f32.mrb[0].mxu0
          %813 = vmatprep.mubr.bf16.mxu0 0
          %814 = vmatmul.mubr.bf16.gmra.mrb[0].mxu0 %v390
          %v815 = vpop.f32.mrb[0].mxu0
          %v816 = vadd.f32 0.0, %v815
          %v817 = vpop.f32.mrb[0].mxu0
          %v818 = vpop.f32.mrb[0].mxu0
          %v819 = vadd.f32 0.0, %v818
          %v820 = vpop.f32.mrb[0].mxu0
          %821 = vmatprep.mubr.bf16.mxu0 0
          %822 = vmatmul.mubr.bf16.gmra.mrb[0].mxu0 %v391
          %v823 = vpop.f32.mrb[0].mxu0
          %v824 = vadd.f32 0.0, %v823
          %v825 = vpop.f32.mrb[0].mxu0
          %v826 = vpop.f32.mrb[0].mxu0
          %v827 = vadd.f32 0.0, %v826
          %v828 = vpop.f32.mrb[0].mxu0
          %829 = vmatprep.mubr.bf16.mxu0 0
          %830 = vmatmul.mubr.bf16.gmra.mrb[0].mxu0 %v392
          %v831 = vpop.f32.mrb[0].mxu0
          %v832 = vadd.f32 0.0, %v831
          %v833 = vpop.f32.mrb[0].mxu0
          %v834 = vpop.f32.mrb[0].mxu0
          %v835 = vadd.f32 0.0, %v834
          %v836 = vpop.f32.mrb[0].mxu0
          %837 = vmatprep.mubr.bf16.mxu0 0
          %838 = vmatmul.mubr.bf16.gmra.mrb[0].mxu0 %v393
          %v839 = vpop.f32.mrb[0].mxu0
          %v840 = vadd.f32 0.0, %v839
          %v841 = vpop.f32.mrb[0].mxu0
          %v842 = vpop.f32.mrb[0].mxu0
          %v843 = vadd.f32 0.0, %v842
          %v844 = vpop.f32.mrb[0].mxu0
          %845 = vmatprep.mubr.bf16.mxu0 0
          %846 = vmatmul.mubr.bf16.gmra.mrb[0].mxu0 %v394
          %v847 = vpop.f32.mrb[0].mxu0
          %v848 = vadd.f32 0.0, %v847
          %v849 = vpop.f32.mrb[0].mxu0
          %v850 = vpop.f32.mrb[0].mxu0
          %v851 = vadd.f32 0.0, %v850
          %v852 = vpop.f32.mrb[0].mxu0
          %853 = vmatprep.mubr.bf16.mxu0 0
          %854 = vmatmul.mubr.bf16.gmra.mrb[0].mxu0 %v395
          %v855 = vpop.f32.mrb[0].mxu0
          %v856 = vadd.f32 0.0, %v855
          %v857 = vpop.f32.mrb[0].mxu0
          %v858 = vpop.f32.mrb[0].mxu0
          %v859 = vadd.f32 0.0, %v858
          %v860 = vpop.f32.mrb[0].mxu0
          %861 = vdwg.mxu0
          %v862 = vpack.c.bf16 %v739, %v736
          %v863 = vpack.c.bf16 %v747, %v744
          %v864 = vpack.c.bf16 %v755, %v752
          %v865 = vpack.c.bf16 %v763, %v760
          %v866 = vpack.c.bf16 %v771, %v768
          %v867 = vpack.c.bf16 %v779, %v776
          %v868 = vpack.c.bf16 %v787, %v784
          %v869 = vpack.c.bf16 %v795, %v792
          %v870 = vpack.c.bf16 %v803, %v800
          %v871 = vpack.c.bf16 %v811, %v808
          %v872 = vpack.c.bf16 %v819, %v816
          %v873 = vpack.c.bf16 %v827, %v824
          %v874 = vpack.c.bf16 %v835, %v832
          %v875 = vpack.c.bf16 %v843, %v840
          %v876 = vpack.c.bf16 %v851, %v848
          %v877 = vpack.c.bf16 %v859, %v856
          %vm878 = vcmask 523264
          %879 = vst.msk [vmem:[#allocation2] sm:$0xff] %vm878, %v621
          %880 = vst.msk [vmem:[#allocation2 + $0x8] sm:$0xff] %vm878, %v622
          %881 = vst.msk [vmem:[#allocation2 + $0x10] sm:$0xff] %vm878, %v623
          %882 = vst.msk [vmem:[#allocation2 + $0x18] sm:$0xff] %vm878, %v624
          %883 = vst.msk [vmem:[#allocation2 + $0x20] sm:$0xff] %vm878, %v625
          %884 = vst.msk [vmem:[#allocation2 + $0x28] sm:$0xff] %vm878, %v626
          %885 = vst.msk [vmem:[#allocation2 + $0x30] sm:$0xff] %vm878, %v627
          %886 = vst.msk [vmem:[#allocation2 + $0x38] sm:$0xff] %vm878, %v628
          %887 = vst.msk [vmem:[#allocation2 + $0x40] sm:$0xff] %vm878, %v629
          %888 = vst.msk [vmem:[#allocation2 + $0x48] sm:$0xff] %vm878, %v630
          %889 = vst.msk [vmem:[#allocation2 + $0x50] sm:$0xff] %vm878, %v631
          %890 = vst.msk [vmem:[#allocation2 + $0x58] sm:$0xff] %vm878, %v632
          %891 = vst.msk [vmem:[#allocation2 + $0x60] sm:$0xff] %vm878, %v633
          %892 = vst.msk [vmem:[#allocation2 + $0x68] sm:$0xff] %vm878, %v634
          %893 = vst.msk [vmem:[#allocation2 + $0x70] sm:$0xff] %vm878, %v635
          %894 = vst.msk [vmem:[#allocation2 + $0x78] sm:$0xff] %vm878, %v636
          %895 = vst.msk [vmem:[#allocation3] sm:$0xff] %vm878, %v862
          %896 = vst.msk [vmem:[#allocation3 + $0x8] sm:$0xff] %vm878, %v863
          %897 = vst.msk [vmem:[#allocation3 + $0x10] sm:$0xff] %vm878, %v864
          %898 = vst.msk [vmem:[#allocation3 + $0x18] sm:$0xff] %vm878, %v865
          %899 = vst.msk [vmem:[#allocation3 + $0x20] sm:$0xff] %vm878, %v866
          %900 = vst.msk [vmem:[#allocation3 + $0x28] sm:$0xff] %vm878, %v867
          %901 = vst.msk [vmem:[#allocation3 + $0x30] sm:$0xff] %vm878, %v868
          %902 = vst.msk [vmem:[#allocation3 + $0x38] sm:$0xff] %vm878, %v869
          %903 = vst.msk [vmem:[#allocation3 + $0x40] sm:$0xff] %vm878, %v870
          %904 = vst.msk [vmem:[#allocation3 + $0x48] sm:$0xff] %vm878, %v871
          %905 = vst.msk [vmem:[#allocation3 + $0x50] sm:$0xff] %vm878, %v872
          %906 = vst.msk [vmem:[#allocation3 + $0x58] sm:$0xff] %vm878, %v873
          %907 = vst.msk [vmem:[#allocation3 + $0x60] sm:$0xff] %vm878, %v874
          %908 = vst.msk [vmem:[#allocation3 + $0x68] sm:$0xff] %vm878, %v875
          %909 = vst.msk [vmem:[#allocation3 + $0x70] sm:$0xff] %vm878, %v876
          %910 = vst.msk [vmem:[#allocation3 + $0x78] sm:$0xff] %vm878, %v877
          %927 = vrot.lane.b32.xlu0 %v621, 64
          %v928 = vpop.permute.xlu0 %927
          %929 = vrot.lane.b32.xlu0 %v622, 64
          %v930 = vpop.permute.xlu0 %929
          %931 = vrot.lane.b32.xlu0 %v623, 64
          %v932 = vpop.permute.xlu0 %931
          %933 = vrot.lane.b32.xlu0 %v624, 64
          %v934 = vpop.permute.xlu0 %933
          %935 = vrot.lane.b32.xlu0 %v625, 64
          %v936 = vpop.permute.xlu0 %935
          %937 = vrot.lane.b32.xlu0 %v626, 64
          %v938 = vpop.permute.xlu0 %937
          %939 = vrot.lane.b32.xlu0 %v627, 64
          %v940 = vpop.permute.xlu0 %939
          %941 = vrot.lane.b32.xlu0 %v628, 64
          %v942 = vpop.permute.xlu0 %941
          %943 = vrot.lane.b32.xlu0 %v629, 64
          %v944 = vpop.permute.xlu0 %943
          %945 = vrot.lane.b32.xlu0 %v630, 64
          %v946 = vpop.permute.xlu0 %945
          %947 = vrot.lane.b32.xlu0 %v631, 64
          %v948 = vpop.permute.xlu0 %947
          %949 = vrot.lane.b32.xlu0 %v632, 64
          %v950 = vpop.permute.xlu0 %949
          %951 = vrot.lane.b32.xlu0 %v633, 64
          %v952 = vpop.permute.xlu0 %951
          %953 = vrot.lane.b32.xlu0 %v634, 64
          %v954 = vpop.permute.xlu0 %953
          %955 = vrot.lane.b32.xlu0 %v635, 64
          %v956 = vpop.permute.xlu0 %955
          %957 = vrot.lane.b32.xlu0 %v636, 64
          %v958 = vpop.permute.xlu0 %957
          %s975 = scalar_lea.vmem [#allocation2], 128
          %976 = vst.msk [vmem:[%s975] sm:$0xff] %vm878, %v928
          %977 = vst.msk [vmem:[%s975 + $0x8] sm:$0xff] %vm878, %v930
          %978 = vst.msk [vmem:[%s975 + $0x10] sm:$0xff] %vm878, %v932
          %979 = vst.msk [vmem:[%s975 + $0x18] sm:$0xff] %vm878, %v934
          %980 = vst.msk [vmem:[%s975 + $0x20] sm:$0xff] %vm878, %v936
          %981 = vst.msk [vmem:[%s975 + $0x28] sm:$0xff] %vm878, %v938
          %982 = vst.msk [vmem:[%s975 + $0x30] sm:$0xff] %vm878, %v940
          %983 = vst.msk [vmem:[%s975 + $0x38] sm:$0xff] %vm878, %v942
          %984 = vst.msk [vmem:[%s975 + $0x40] sm:$0xff] %vm878, %v944
          %985 = vst.msk [vmem:[%s975 + $0x48] sm:$0xff] %vm878, %v946
          %986 = vst.msk [vmem:[%s975 + $0x50] sm:$0xff] %vm878, %v948
          %987 = vst.msk [vmem:[%s975 + $0x58] sm:$0xff] %vm878, %v950
          %988 = vst.msk [vmem:[%s975 + $0x60] sm:$0xff] %vm878, %v952
          %989 = vst.msk [vmem:[%s975 + $0x68] sm:$0xff] %vm878, %v954
          %990 = vst.msk [vmem:[%s975 + $0x70] sm:$0xff] %vm878, %v956
          %991 = vst.msk [vmem:[%s975 + $0x78] sm:$0xff] %vm878, %v958
          %1008 = vrot.lane.b32.xlu0 %v862, 64
          %v1009 = vpop.permute.xlu0 %1008
          %1010 = vrot.lane.b32.xlu0 %v863, 64
          %v1011 = vpop.permute.xlu0 %1010
          %1012 = vrot.lane.b32.xlu0 %v864, 64
          %v1013 = vpop.permute.xlu0 %1012
          %1014 = vrot.lane.b32.xlu0 %v865, 64
          %v1015 = vpop.permute.xlu0 %1014
          %1016 = vrot.lane.b32.xlu0 %v866, 64
          %v1017 = vpop.permute.xlu0 %1016
          %1018 = vrot.lane.b32.xlu0 %v867, 64
          %v1019 = vpop.permute.xlu0 %1018
          %1020 = vrot.lane.b32.xlu0 %v868, 64
          %v1021 = vpop.permute.xlu0 %1020
          %1022 = vrot.lane.b32.xlu0 %v869, 64
          %v1023 = vpop.permute.xlu0 %1022
          %1024 = vrot.lane.b32.xlu0 %v870, 64
          %v1025 = vpop.permute.xlu0 %1024
          %1026 = vrot.lane.b32.xlu0 %v871, 64
          %v1027 = vpop.permute.xlu0 %1026
          %1028 = vrot.lane.b32.xlu0 %v872, 64
          %v1029 = vpop.permute.xlu0 %1028
          %1030 = vrot.lane.b32.xlu0 %v873, 64
          %v1031 = vpop.permute.xlu0 %1030
          %1032 = vrot.lane.b32.xlu0 %v874, 64
          %v1033 = vpop.permute.xlu0 %1032
          %1034 = vrot.lane.b32.xlu0 %v875, 64
          %v1035 = vpop.permute.xlu0 %1034
          %1036 = vrot.lane.b32.xlu0 %v876, 64
          %v1037 = vpop.permute.xlu0 %1036
          %1038 = vrot.lane.b32.xlu0 %v877, 64
          %v1039 = vpop.permute.xlu0 %1038
          %s1056 = scalar_lea.vmem [#allocation3], 128
          %1057 = vst.msk [vmem:[%s1056] sm:$0xff] %vm878, %v1009
          %1058 = vst.msk [vmem:[%s1056 + $0x8] sm:$0xff] %vm878, %v1011
          %1059 = vst.msk [vmem:[%s1056 + $0x10] sm:$0xff] %vm878, %v1013
          %1060 = vst.msk [vmem:[%s1056 + $0x18] sm:$0xff] %vm878, %v1015
          %1061 = vst.msk [vmem:[%s1056 + $0x20] sm:$0xff] %vm878, %v1017
          %1062 = vst.msk [vmem:[%s1056 + $0x28] sm:$0xff] %vm878, %v1019
          %1063 = vst.msk [vmem:[%s1056 + $0x30] sm:$0xff] %vm878, %v1021
          %1064 = vst.msk [vmem:[%s1056 + $0x38] sm:$0xff] %vm878, %v1023
          %1065 = vst.msk [vmem:[%s1056 + $0x40] sm:$0xff] %vm878, %v1025
          %1066 = vst.msk [vmem:[%s1056 + $0x48] sm:$0xff] %vm878, %v1027
          %1067 = vst.msk [vmem:[%s1056 + $0x50] sm:$0xff] %vm878, %v1029
          %1068 = vst.msk [vmem:[%s1056 + $0x58] sm:$0xff] %vm878, %v1031
          %1069 = vst.msk [vmem:[%s1056 + $0x60] sm:$0xff] %vm878, %v1033
          %1070 = vst.msk [vmem:[%s1056 + $0x68] sm:$0xff] %vm878, %v1035
          %1071 = vst.msk [vmem:[%s1056 + $0x70] sm:$0xff] %vm878, %v1037
          %1072 = vst.msk [vmem:[%s1056 + $0x78] sm:$0xff] %vm878, %v1039
        $region68: #{tpu_custom_call.1} parent=43 // pred_fallthru
          _
        %s1073 = smul.u32 %s30, 128
        %s1074 = scalar_lea.vmem %s297, %s1073 [#allocation5]
        %v1075 = vld [vmem:[%s1074] sm:$0xff]
        %v1076 = vld [vmem:[%s1074 + $0x8] sm:$0xff]
        %v1077 = vld [vmem:[%s1074 + $0x10] sm:$0xff]
        %v1078 = vld [vmem:[%s1074 + $0x18] sm:$0xff]
        %v1079 = vld [vmem:[%s1074 + $0x20] sm:$0xff]
        %v1080 = vld [vmem:[%s1074 + $0x28] sm:$0xff]
        %v1081 = vld [vmem:[%s1074 + $0x30] sm:$0xff]
        %v1082 = vld [vmem:[%s1074 + $0x38] sm:$0xff]
        %v1083 = vld [vmem:[%s1074 + $0x40] sm:$0xff]
        %v1084 = vld [vmem:[%s1074 + $0x48] sm:$0xff]
        %v1085 = vld [vmem:[%s1074 + $0x50] sm:$0xff]
        %v1086 = vld [vmem:[%s1074 + $0x58] sm:$0xff]
        %v1087 = vld [vmem:[%s1074 + $0x60] sm:$0xff]
        %v1088 = vld [vmem:[%s1074 + $0x68] sm:$0xff]
        %v1089 = vld [vmem:[%s1074 + $0x70] sm:$0xff]
        %v1090 = vld [vmem:[%s1074 + $0x78] sm:$0xff]
        %v1091 = vpack.c.bf16 %v1076, %v1075
        %v1092 = vpack.c.bf16 %v1078, %v1077
        %v1093 = vpack.c.bf16 %v1080, %v1079
        %v1094 = vpack.c.bf16 %v1082, %v1081
        %v1095 = vpack.c.bf16 %v1084, %v1083
        %v1096 = vpack.c.bf16 %v1086, %v1085
        %v1097 = vpack.c.bf16 %v1088, %v1087
        %v1098 = vpack.c.bf16 %v1090, %v1089
        %v1099 = vld [vmem:[#allocation8] sm:$0xf]
        %v1100 = vld [vmem:[#allocation8 + $0x4] sm:$0xf]
        %v1101 = vld [vmem:[#allocation8 + $0x8] sm:$0xf]
        %v1102 = vld [vmem:[#allocation8 + $0xc] sm:$0xf]
        %v1103 = vld [vmem:[#allocation8 + $0x10] sm:$0xf]
        %v1104 = vld [vmem:[#allocation8 + $0x14] sm:$0xf]
        %v1105 = vld [vmem:[#allocation8 + $0x18] sm:$0xf]
        %v1106 = vld [vmem:[#allocation8 + $0x1c] sm:$0xf]
        %v1107 = vld [vmem:[#allocation8 + $0x20] sm:$0xf]
        %v1108 = vld [vmem:[#allocation8 + $0x24] sm:$0xf]
        %v1109 = vld [vmem:[#allocation8 + $0x28] sm:$0xf]
        %v1110 = vld [vmem:[#allocation8 + $0x2c] sm:$0xf]
        %v1111 = vld [vmem:[#allocation8 + $0x30] sm:$0xf]
        %v1112 = vld [vmem:[#allocation8 + $0x34] sm:$0xf]
        %v1113 = vld [vmem:[#allocation8 + $0x38] sm:$0xf]
        %v1114 = vld [vmem:[#allocation8 + $0x3c] sm:$0xf]
        %v1131 = vunpack.c.l.b16 %v1099
        %v1132 = vunpack.c.l.b16 %v1100
        %v1133 = vunpack.c.l.b16 %v1101
        %v1134 = vunpack.c.l.b16 %v1102
        %v1135 = vunpack.c.l.b16 %v1103
        %v1136 = vunpack.c.l.b16 %v1104
        %v1137 = vunpack.c.l.b16 %v1105
        %v1138 = vunpack.c.l.b16 %v1106
        %v1139 = vunpack.c.l.b16 %v1107
        %v1140 = vunpack.c.l.b16 %v1108
        %v1141 = vunpack.c.l.b16 %v1109
        %v1142 = vunpack.c.l.b16 %v1110
        %v1143 = vunpack.c.l.b16 %v1111
        %v1144 = vunpack.c.l.b16 %v1112
        %v1145 = vunpack.c.l.b16 %v1113
        %v1146 = vunpack.c.l.b16 %v1114
        %v1147 = vpack.c.b16 %v1132, %v1131
        %v1148 = vpack.c.b16 %v1134, %v1133
        %v1149 = vpack.c.b16 %v1136, %v1135
        %v1150 = vpack.c.b16 %v1138, %v1137
        %v1151 = vpack.c.b16 %v1140, %v1139
        %v1152 = vpack.c.b16 %v1142, %v1141
        %v1153 = vpack.c.b16 %v1144, %v1143
        %v1154 = vpack.c.b16 %v1146, %v1145
        %1163 = vmatprep.subr.bf16.mxu0 0
        %1164 = vmatpush1.bf16.msra.mxu0 %v1147
        %1165 = vmatprep.subr.bf16.mxu0 0
        %1166 = vmatpush1.bf16.msra.mxu0 %v1148
        %1167 = vmatprep.subr.bf16.mxu0 0
        %1168 = vmatpush1.bf16.msra.mxu0 %v1149
        %1169 = vmatprep.subr.bf16.mxu0 0
        %1170 = vmatpush1.bf16.msra.mxu0 %v1150
        %1171 = vmatprep.subr.bf16.mxu0 0
        %1172 = vmatpush1.bf16.msra.mxu0 %v1151
        %1173 = vmatprep.subr.bf16.mxu0 0
        %1174 = vmatpush1.bf16.msra.mxu0 %v1152
        %1175 = vmatprep.subr.bf16.mxu0 0
        %1176 = vmatpush1.bf16.msra.mxu0 %v1153
        %1177 = vmatprep.subr.bf16.mxu0 0
        %1178 = vmatpush1.bf16.msra.mxu0 %v1154
        %1179 = vmatprep.subr.bf16.mxu0 0
        %1180 = vmatpush1.bf16.msra.mxu0 0
        %1181 = vmatprep.subr.bf16.mxu0 0
        %1182 = vmatpush1.bf16.msra.mxu0 0
        %1183 = vmatprep.subr.bf16.mxu0 0
        %1184 = vmatpush1.bf16.msra.mxu0 0
        %1185 = vmatprep.subr.bf16.mxu0 0
        %1186 = vmatpush1.bf16.msra.mxu0 0
        %1187 = vmatprep.subr.bf16.mxu0 0
        %1188 = vmatpush1.bf16.msra.mxu0 0
        %1189 = vmatprep.subr.bf16.mxu0 0
        %1190 = vmatpush1.bf16.msra.mxu0 0
        %1191 = vmatprep.subr.bf16.mxu0 0
        %1192 = vmatpush1.bf16.msra.mxu0 0
        %1193 = vmatprep.subr.bf16.mxu0 0
        %1194 = vmatpush1.bf16.msra.mxu0 0
        %1195 = vmatprep.mubr.bf16.mxu0 0
        %1196 = vmatmul.mubr.bf16.gmra.mrb[0].mxu0 %v1091
        %v1197 = vpop.f32.mrb[0].mxu0
        %v1198 = vadd.f32 0.0, %v1197
        %v1199 = vpop.f32.mrb[0].mxu0
        %v1200 = vpop.f32.mrb[0].mxu0
        %v1201 = vadd.f32 0.0, %v1200
        %v1202 = vpop.f32.mrb[0].mxu0
        %1203 = vmatprep.mubr.bf16.mxu0 0
        %1204 = vmatmul.mubr.bf16.gmra.mrb[0].mxu0 %v1092
        %v1205 = vpop.f32.mrb[0].mxu0
        %v1206 = vadd.f32 0.0, %v1205
        %v1207 = vpop.f32.mrb[0].mxu0
        %v1208 = vpop.f32.mrb[0].mxu0
        %v1209 = vadd.f32 0.0, %v1208
        %v1210 = vpop.f32.mrb[0].mxu0
        %1211 = vmatprep.mubr.bf16.mxu0 0
        %1212 = vmatmul.mubr.bf16.gmra.mrb[0].mxu0 %v1093
        %v1213 = vpop.f32.mrb[0].mxu0
        %v1214 = vadd.f32 0.0, %v1213
        %v1215 = vpop.f32.mrb[0].mxu0
        %v1216 = vpop.f32.mrb[0].mxu0
        %v1217 = vadd.f32 0.0, %v1216
        %v1218 = vpop.f32.mrb[0].mxu0
        %1219 = vmatprep.mubr.bf16.mxu0 0
        %1220 = vmatmul.mubr.bf16.gmra.mrb[0].mxu0 %v1094
        %v1221 = vpop.f32.mrb[0].mxu0
        %v1222 = vadd.f32 0.0, %v1221
        %v1223 = vpop.f32.mrb[0].mxu0
        %v1224 = vpop.f32.mrb[0].mxu0
        %v1225 = vadd.f32 0.0, %v1224
        %v1226 = vpop.f32.mrb[0].mxu0
        %1227 = vmatprep.mubr.bf16.mxu0 0
        %1228 = vmatmul.mubr.bf16.gmra.mrb[0].mxu0 %v1095
        %v1229 = vpop.f32.mrb[0].mxu0
        %v1230 = vadd.f32 0.0, %v1229
        %v1231 = vpop.f32.mrb[0].mxu0
        %v1232 = vpop.f32.mrb[0].mxu0
        %v1233 = vadd.f32 0.0, %v1232
        %v1234 = vpop.f32.mrb[0].mxu0
        %1235 = vmatprep.mubr.bf16.mxu0 0
        %1236 = vmatmul.mubr.bf16.gmra.mrb[0].mxu0 %v1096
        %v1237 = vpop.f32.mrb[0].mxu0
        %v1238 = vadd.f32 0.0, %v1237
        %v1239 = vpop.f32.mrb[0].mxu0
        %v1240 = vpop.f32.mrb[0].mxu0
        %v1241 = vadd.f32 0.0, %v1240
        %v1242 = vpop.f32.mrb[0].mxu0
        %1243 = vmatprep.mubr.bf16.mxu0 0
        %1244 = vmatmul.mubr.bf16.gmra.mrb[0].mxu0 %v1097
        %v1245 = vpop.f32.mrb[0].mxu0
        %v1246 = vadd.f32 0.0, %v1245
        %v1247 = vpop.f32.mrb[0].mxu0
        %v1248 = vpop.f32.mrb[0].mxu0
        %v1249 = vadd.f32 0.0, %v1248
        %v1250 = vpop.f32.mrb[0].mxu0
        %1251 = vmatprep.mubr.bf16.mxu0 0
        %1252 = vmatmul.mubr.bf16.gmra.mrb[0].mxu0 %v1098
        %v1253 = vpop.f32.mrb[0].mxu0
        %v1254 = vadd.f32 0.0, %v1253
        %v1255 = vpop.f32.mrb[0].mxu0
        %v1256 = vpop.f32.mrb[0].mxu0
        %v1257 = vadd.f32 0.0, %v1256
        %v1258 = vpop.f32.mrb[0].mxu0
        %1259 = vdwg.mxu0
        %v1260 = vpack.c.bf16 %v1201, %v1198
        %v1261 = vpack.c.bf16 %v1209, %v1206
        %v1262 = vpack.c.bf16 %v1217, %v1214
        %v1263 = vpack.c.bf16 %v1225, %v1222
        %v1264 = vpack.c.bf16 %v1233, %v1230
        %v1265 = vpack.c.bf16 %v1241, %v1238
        %v1266 = vpack.c.bf16 %v1249, %v1246
        %v1267 = vpack.c.bf16 %v1257, %v1254
        %v1268 = vld [vmem:[#allocation2] sm:$0xff]
        %v1269 = vld [vmem:[#allocation2 + $0x8] sm:$0xff]
        %v1270 = vld [vmem:[#allocation2 + $0x10] sm:$0xff]
        %v1271 = vld [vmem:[#allocation2 + $0x18] sm:$0xff]
        %v1272 = vld [vmem:[#allocation2 + $0x20] sm:$0xff]
        %v1273 = vld [vmem:[#allocation2 + $0x28] sm:$0xff]
        %v1274 = vld [vmem:[#allocation2 + $0x30] sm:$0xff]
        %v1275 = vld [vmem:[#allocation2 + $0x38] sm:$0xff]
        %v1276 = vld [vmem:[#allocation2 + $0x40] sm:$0xff]
        %v1277 = vld [vmem:[#allocation2 + $0x48] sm:$0xff]
        %v1278 = vld [vmem:[#allocation2 + $0x50] sm:$0xff]
        %v1279 = vld [vmem:[#allocation2 + $0x58] sm:$0xff]
        %v1280 = vld [vmem:[#allocation2 + $0x60] sm:$0xff]
        %v1281 = vld [vmem:[#allocation2 + $0x68] sm:$0xff]
        %v1282 = vld [vmem:[#allocation2 + $0x70] sm:$0xff]
        %v1283 = vld [vmem:[#allocation2 + $0x78] sm:$0xff]
        %vm1284 = vcmask 523264
        %v1286 = vsel %vm1284, %v1260, 0
        %v1289 = vsel %vm1284, %v1261, 0
        %v1292 = vsel %vm1284, %v1262, 0
        %v1295 = vsel %vm1284, %v1263, 0
        %v1298 = vsel %vm1284, %v1264, 0
        %v1301 = vsel %vm1284, %v1265, 0
        %v1304 = vsel %vm1284, %v1266, 0
        %v1307 = vsel %vm1284, %v1267, 0
        %v1310 = vsel %vm1284, %v1268, 0
        %v1313 = vsel %vm1284, %v1269, 0
        %v1316 = vsel %vm1284, %v1270, 0
        %v1319 = vsel %vm1284, %v1271, 0
        %v1322 = vsel %vm1284, %v1272, 0
        %v1325 = vsel %vm1284, %v1273, 0
        %v1328 = vsel %vm1284, %v1274, 0
        %v1331 = vsel %vm1284, %v1275, 0
        %v1334 = vsel %vm1284, %v1276, 0
        %v1337 = vsel %vm1284, %v1277, 0
        %v1340 = vsel %vm1284, %v1278, 0
        %v1343 = vsel %vm1284, %v1279, 0
        %v1346 = vsel %vm1284, %v1280, 0
        %v1349 = vsel %vm1284, %v1281, 0
        %v1352 = vsel %vm1284, %v1282, 0
        %v1355 = vsel %vm1284, %v1283, 0
        %1357 = vmatprep.subr.bf16.mxu0 0
        %1358 = vmatpush1.bf16.xpose.msra.mxu0 %v1310
        %1359 = vmatprep.subr.bf16.mxu0 0
        %1360 = vmatpush1.bf16.xpose.msra.mxu0 %v1313
        %1361 = vmatprep.subr.bf16.mxu0 0
        %1362 = vmatpush1.bf16.xpose.msra.mxu0 %v1316
        %1363 = vmatprep.subr.bf16.mxu0 0
        %1364 = vmatpush1.bf16.xpose.msra.mxu0 %v1319
        %1365 = vmatprep.subr.bf16.mxu0 0
        %1366 = vmatpush1.bf16.xpose.msra.mxu0 %v1322
        %1367 = vmatprep.subr.bf16.mxu0 0
        %1368 = vmatpush1.bf16.xpose.msra.mxu0 %v1325
        %1369 = vmatprep.subr.bf16.mxu0 0
        %1370 = vmatpush1.bf16.xpose.msra.mxu0 %v1328
        %1371 = vmatprep.subr.bf16.mxu0 0
        %1372 = vmatpush1.bf16.xpose.msra.mxu0 %v1331
        %1373 = vmatprep.subr.bf16.mxu0 0
        %1374 = vmatpush1.bf16.xpose.msra.mxu0 %v1334
        %1375 = vmatprep.subr.bf16.mxu0 0
        %1376 = vmatpush1.bf16.xpose.msra.mxu0 %v1337
        %1377 = vmatprep.subr.bf16.mxu0 0
        %1378 = vmatpush1.bf16.xpose.msra.mxu0 %v1340
        %1379 = vmatprep.subr.bf16.mxu0 0
        %1380 = vmatpush1.bf16.xpose.msra.mxu0 %v1343
        %1381 = vmatprep.subr.bf16.mxu0 0
        %1382 = vmatpush1.bf16.xpose.msra.mxu0 %v1346
        %1383 = vmatprep.subr.bf16.mxu0 0
        %1384 = vmatpush1.bf16.xpose.msra.mxu0 %v1349
        %1385 = vmatprep.subr.bf16.mxu0 0
        %1386 = vmatpush1.bf16.xpose.msra.mxu0 %v1352
        %1387 = vmatprep.subr.bf16.mxu0 0
        %1388 = vmatpush1.bf16.xpose.msra.mxu0 %v1355
        %1389 = vmatprep.mubr.bf16.mxu0 0
        %1390 = vmatmul.mubr.bf16.gmra.mrb[0].mxu0 %v1286
        %v1391 = vpop.f32.mrb[0].mxu0
        %v1392 = vadd.f32 0.0, %v1391
        %v1393 = vpop.f32.mrb[0].mxu0
        %v1394 = vadd.f32 0.0, %v1393
        %v1395 = vpop.f32.mrb[0].mxu0
        %v1396 = vadd.f32 0.0, %v1395
        %v1397 = vpop.f32.mrb[0].mxu0
        %v1398 = vadd.f32 0.0, %v1397
        %1399 = vmatprep.mubr.bf16.mxu0 0
        %1400 = vmatmul.mubr.bf16.gmra.mrb[0].mxu0 %v1289
        %v1401 = vpop.f32.mrb[0].mxu0
        %v1402 = vadd.f32 0.0, %v1401
        %v1403 = vpop.f32.mrb[0].mxu0
        %v1404 = vadd.f32 0.0, %v1403
        %v1405 = vpop.f32.mrb[0].mxu0
        %v1406 = vadd.f32 0.0, %v1405
        %v1407 = vpop.f32.mrb[0].mxu0
        %v1408 = vadd.f32 0.0, %v1407
        %1409 = vmatprep.mubr.bf16.mxu0 0
        %1410 = vmatmul.mubr.bf16.gmra.mrb[0].mxu0 %v1292
        %v1411 = vpop.f32.mrb[0].mxu0
        %v1412 = vadd.f32 0.0, %v1411
        %v1413 = vpop.f32.mrb[0].mxu0
        %v1414 = vadd.f32 0.0, %v1413
        %v1415 = vpop.f32.mrb[0].mxu0
        %v1416 = vadd.f32 0.0, %v1415
        %v1417 = vpop.f32.mrb[0].mxu0
        %v1418 = vadd.f32 0.0, %v1417
        %1419 = vmatprep.mubr.bf16.mxu0 0
        %1420 = vmatmul.mubr.bf16.gmra.mrb[0].mxu0 %v1295
        %v1421 = vpop.f32.mrb[0].mxu0
        %v1422 = vadd.f32 0.0, %v1421
        %v1423 = vpop.f32.mrb[0].mxu0
        %v1424 = vadd.f32 0.0, %v1423
        %v1425 = vpop.f32.mrb[0].mxu0
        %v1426 = vadd.f32 0.0, %v1425
        %v1427 = vpop.f32.mrb[0].mxu0
        %v1428 = vadd.f32 0.0, %v1427
        %1429 = vmatprep.mubr.bf16.mxu0 0
        %1430 = vmatmul.mubr.bf16.gmra.mrb[0].mxu0 %v1298
        %v1431 = vpop.f32.mrb[0].mxu0
        %v1432 = vadd.f32 0.0, %v1431
        %v1433 = vpop.f32.mrb[0].mxu0
        %v1434 = vadd.f32 0.0, %v1433
        %v1435 = vpop.f32.mrb[0].mxu0
        %v1436 = vadd.f32 0.0, %v1435
        %v1437 = vpop.f32.mrb[0].mxu0
        %v1438 = vadd.f32 0.0, %v1437
        %1439 = vmatprep.mubr.bf16.mxu0 0
        %1440 = vmatmul.mubr.bf16.gmra.mrb[0].mxu0 %v1301
        %v1441 = vpop.f32.mrb[0].mxu0
        %v1442 = vadd.f32 0.0, %v1441
        %v1443 = vpop.f32.mrb[0].mxu0
        %v1444 = vadd.f32 0.0, %v1443
        %v1445 = vpop.f32.mrb[0].mxu0
        %v1446 = vadd.f32 0.0, %v1445
        %v1447 = vpop.f32.mrb[0].mxu0
        %v1448 = vadd.f32 0.0, %v1447
        %1449 = vmatprep.mubr.bf16.mxu0 0
        %1450 = vmatmul.mubr.bf16.gmra.mrb[0].mxu0 %v1304
        %v1451 = vpop.f32.mrb[0].mxu0
        %v1452 = vadd.f32 0.0, %v1451
        %v1453 = vpop.f32.mrb[0].mxu0
        %v1454 = vadd.f32 0.0, %v1453
        %v1455 = vpop.f32.mrb[0].mxu0
        %v1456 = vadd.f32 0.0, %v1455
        %v1457 = vpop.f32.mrb[0].mxu0
        %v1458 = vadd.f32 0.0, %v1457
        %1459 = vmatprep.mubr.bf16.mxu0 0
        %1460 = vmatmul.mubr.bf16.gmra.mrb[0].mxu0 %v1307
        %v1461 = vpop.f32.mrb[0].mxu0
        %v1462 = vadd.f32 0.0, %v1461
        %v1463 = vpop.f32.mrb[0].mxu0
        %v1464 = vadd.f32 0.0, %v1463
        %v1465 = vpop.f32.mrb[0].mxu0
        %v1466 = vadd.f32 0.0, %v1465
        %v1467 = vpop.f32.mrb[0].mxu0
        %v1468 = vadd.f32 0.0, %v1467
        %1469 = vdwg.mxu0
        %v1470 = vmax.f32 %v1392, %v1394
        %1471 = vmax.xlane.f32.xlu0 %v1470
        %v1472 = vpop.xlane.xlu0 %1471
        %v1473 = vmax.f32 %v1396, %v1398
        %1474 = vmax.xlane.f32.xlu0 %v1473
        %v1475 = vpop.xlane.xlu0 %1474
        %v1476 = vmax.f32 %v1402, %v1404
        %1477 = vmax.xlane.f32.xlu0 %v1476
        %v1478 = vpop.xlane.xlu0 %1477
        %v1479 = vmax.f32 %v1406, %v1408
        %1480 = vmax.xlane.f32.xlu0 %v1479
        %v1481 = vpop.xlane.xlu0 %1480
        %v1482 = vmax.f32 %v1412, %v1414
        %1483 = vmax.xlane.f32.xlu0 %v1482
        %v1484 = vpop.xlane.xlu0 %1483
        %v1485 = vmax.f32 %v1416, %v1418
        %1486 = vmax.xlane.f32.xlu0 %v1485
        %v1487 = vpop.xlane.xlu0 %1486
        %v1488 = vmax.f32 %v1422, %v1424
        %1489 = vmax.xlane.f32.xlu0 %v1488
        %v1490 = vpop.xlane.xlu0 %1489
        %v1491 = vmax.f32 %v1426, %v1428
        %1492 = vmax.xlane.f32.xlu0 %v1491
        %v1493 = vpop.xlane.xlu0 %1492
        %v1494 = vmax.f32 %v1432, %v1434
        %1495 = vmax.xlane.f32.xlu0 %v1494
        %v1496 = vpop.xlane.xlu0 %1495
        %v1497 = vmax.f32 %v1436, %v1438
        %1498 = vmax.xlane.f32.xlu0 %v1497
        %v1499 = vpop.xlane.xlu0 %1498
        %v1500 = vmax.f32 %v1442, %v1444
        %1501 = vmax.xlane.f32.xlu0 %v1500
        %v1502 = vpop.xlane.xlu0 %1501
        %v1503 = vmax.f32 %v1446, %v1448
        %1504 = vmax.xlane.f32.xlu0 %v1503
        %v1505 = vpop.xlane.xlu0 %1504
        %v1506 = vmax.f32 %v1452, %v1454
        %1507 = vmax.xlane.f32.xlu0 %v1506
        %v1508 = vpop.xlane.xlu0 %1507
        %v1509 = vmax.f32 %v1456, %v1458
        %1510 = vmax.xlane.f32.xlu0 %v1509
        %v1511 = vpop.xlane.xlu0 %1510
        %v1512 = vmax.f32 %v1462, %v1464
        %1513 = vmax.xlane.f32.xlu0 %v1512
        %v1514 = vpop.xlane.xlu0 %1513
        %v1515 = vmax.f32 %v1466, %v1468
        %1516 = vmax.xlane.f32.xlu0 %v1515
        %v1517 = vpop.xlane.xlu0 %1516
        %v1518 = vsub.f32 %v1392, %v1472
        %v1519 = vsub.f32 %v1394, %v1472
        %v1520 = vsub.f32 %v1396, %v1475
        %v1521 = vsub.f32 %v1398, %v1475
        %v1522 = vsub.f32 %v1402, %v1478
        %v1523 = vsub.f32 %v1404, %v1478
        %v1524 = vsub.f32 %v1406, %v1481
        %v1525 = vsub.f32 %v1408, %v1481
        %v1526 = vsub.f32 %v1412, %v1484
        %v1527 = vsub.f32 %v1414, %v1484
        %v1528 = vsub.f32 %v1416, %v1487
        %v1529 = vsub.f32 %v1418, %v1487
        %v1530 = vsub.f32 %v1422, %v1490
        %v1531 = vsub.f32 %v1424, %v1490
        %v1532 = vsub.f32 %v1426, %v1493
        %v1533 = vsub.f32 %v1428, %v1493
        %v1534 = vsub.f32 %v1432, %v1496
        %v1535 = vsub.f32 %v1434, %v1496
        %v1536 = vsub.f32 %v1436, %v1499
        %v1537 = vsub.f32 %v1438, %v1499
        %v1538 = vsub.f32 %v1442, %v1502
        %v1539 = vsub.f32 %v1444, %v1502
        %v1540 = vsub.f32 %v1446, %v1505
        %v1541 = vsub.f32 %v1448, %v1505
        %v1542 = vsub.f32 %v1452, %v1508
        %v1543 = vsub.f32 %v1454, %v1508
        %v1544 = vsub.f32 %v1456, %v1511
        %v1545 = vsub.f32 %v1458, %v1511
        %v1546 = vsub.f32 %v1462, %v1514
        %v1547 = vsub.f32 %v1464, %v1514
        %v1548 = vsub.f32 %v1466, %v1517
        %v1549 = vsub.f32 %v1468, %v1517
        %v1550 = vmul.f32 %v1518, 1.442695
        %v1551 = vpow.pop %v1550
        %v1552 = vmul.f32 %v1519, 1.442695
        %v1553 = vpow.pop %v1552
        %v1554 = vmul.f32 %v1520, 1.442695
        %v1555 = vpow.pop %v1554
        %v1556 = vmul.f32 %v1521, 1.442695
        %v1557 = vpow.pop %v1556
        %v1558 = vmul.f32 %v1522, 1.442695
        %v1559 = vpow.pop %v1558
        %v1560 = vmul.f32 %v1523, 1.442695
        %v1561 = vpow.pop %v1560
        %v1562 = vmul.f32 %v1524, 1.442695
        %v1563 = vpow.pop %v1562
        %v1564 = vmul.f32 %v1525, 1.442695
        %v1565 = vpow.pop %v1564
        %v1566 = vmul.f32 %v1526, 1.442695
        %v1567 = vpow.pop %v1566
        %v1568 = vmul.f32 %v1527, 1.442695
        %v1569 = vpow.pop %v1568
        %v1570 = vmul.f32 %v1528, 1.442695
        %v1571 = vpow.pop %v1570
        %v1572 = vmul.f32 %v1529, 1.442695
        %v1573 = vpow.pop %v1572
        %v1574 = vmul.f32 %v1530, 1.442695
        %v1575 = vpow.pop %v1574
        %v1576 = vmul.f32 %v1531, 1.442695
        %v1577 = vpow.pop %v1576
        %v1578 = vmul.f32 %v1532, 1.442695
        %v1579 = vpow.pop %v1578
        %v1580 = vmul.f32 %v1533, 1.442695
        %v1581 = vpow.pop %v1580
        %v1582 = vmul.f32 %v1534, 1.442695
        %v1583 = vpow.pop %v1582
        %v1584 = vmul.f32 %v1535, 1.442695
        %v1585 = vpow.pop %v1584
        %v1586 = vmul.f32 %v1536, 1.442695
        %v1587 = vpow.pop %v1586
        %v1588 = vmul.f32 %v1537, 1.442695
        %v1589 = vpow.pop %v1588
        %v1590 = vmul.f32 %v1538, 1.442695
        %v1591 = vpow.pop %v1590
        %v1592 = vmul.f32 %v1539, 1.442695
        %v1593 = vpow.pop %v1592
        %v1594 = vmul.f32 %v1540, 1.442695
        %v1595 = vpow.pop %v1594
        %v1596 = vmul.f32 %v1541, 1.442695
        %v1597 = vpow.pop %v1596
        %v1598 = vmul.f32 %v1542, 1.442695
        %v1599 = vpow.pop %v1598
        %v1600 = vmul.f32 %v1543, 1.442695
        %v1601 = vpow.pop %v1600
        %v1602 = vmul.f32 %v1544, 1.442695
        %v1603 = vpow.pop %v1602
        %v1604 = vmul.f32 %v1545, 1.442695
        %v1605 = vpow.pop %v1604
        %v1606 = vmul.f32 %v1546, 1.442695
        %v1607 = vpow.pop %v1606
        %v1608 = vmul.f32 %v1547, 1.442695
        %v1609 = vpow.pop %v1608
        %v1610 = vmul.f32 %v1548, 1.442695
        %v1611 = vpow.pop %v1610
        %v1612 = vmul.f32 %v1549, 1.442695
        %v1613 = vpow.pop %v1612
        %v1614 = vadd.f32 %v1551, %v1553
        %1615 = vadd.xlane.f32.xlu0 %v1614
        %v1616 = vpop.xlane.xlu0 %1615
        %v1617 = vadd.f32 %v1555, %v1557
        %1618 = vadd.xlane.f32.xlu0 %v1617
        %v1619 = vpop.xlane.xlu0 %1618
        %v1620 = vadd.f32 %v1559, %v1561
        %1621 = vadd.xlane.f32.xlu0 %v1620
        %v1622 = vpop.xlane.xlu0 %1621
        %v1623 = vadd.f32 %v1563, %v1565
        %1624 = vadd.xlane.f32.xlu0 %v1623
        %v1625 = vpop.xlane.xlu0 %1624
        %v1626 = vadd.f32 %v1567, %v1569
        %1627 = vadd.xlane.f32.xlu0 %v1626
        %v1628 = vpop.xlane.xlu0 %1627
        %v1629 = vadd.f32 %v1571, %v1573
        %1630 = vadd.xlane.f32.xlu0 %v1629
        %v1631 = vpop.xlane.xlu0 %1630
        %v1632 = vadd.f32 %v1575, %v1577
        %1633 = vadd.xlane.f32.xlu0 %v1632
        %v1634 = vpop.xlane.xlu0 %1633
        %v1635 = vadd.f32 %v1579, %v1581
        %1636 = vadd.xlane.f32.xlu0 %v1635
        %v1637 = vpop.xlane.xlu0 %1636
        %v1638 = vadd.f32 %v1583, %v1585
        %1639 = vadd.xlane.f32.xlu0 %v1638
        %v1640 = vpop.xlane.xlu0 %1639
        %v1641 = vadd.f32 %v1587, %v1589
        %1642 = vadd.xlane.f32.xlu0 %v1641
        %v1643 = vpop.xlane.xlu0 %1642
        %v1644 = vadd.f32 %v1591, %v1593
        %1645 = vadd.xlane.f32.xlu0 %v1644
        %v1646 = vpop.xlane.xlu0 %1645
        %v1647 = vadd.f32 %v1595, %v1597
        %1648 = vadd.xlane.f32.xlu0 %v1647
        %v1649 = vpop.xlane.xlu0 %1648
        %v1650 = vadd.f32 %v1599, %v1601
        %1651 = vadd.xlane.f32.xlu0 %v1650
        %v1652 = vpop.xlane.xlu0 %1651
        %v1653 = vadd.f32 %v1603, %v1605
        %1654 = vadd.xlane.f32.xlu0 %v1653
        %v1655 = vpop.xlane.xlu0 %1654
        %v1656 = vadd.f32 %v1607, %v1609
        %1657 = vadd.xlane.f32.xlu0 %v1656
        %v1658 = vpop.xlane.xlu0 %1657
        %v1659 = vadd.f32 %v1611, %v1613
        %1660 = vadd.xlane.f32.xlu0 %v1659
        %v1661 = vpop.xlane.xlu0 %1660
        %v1662 = vrcp.pop %v1616
        %v1663 = vmul.f32 1.0, %v1662
        %v1664 = vrcp.pop %v1619
        %v1665 = vmul.f32 1.0, %v1664
        %v1666 = vrcp.pop %v1622
        %v1667 = vmul.f32 1.0, %v1666
        %v1668 = vrcp.pop %v1625
        %v1669 = vmul.f32 1.0, %v1668
        %v1670 = vrcp.pop %v1628
        %v1671 = vmul.f32 1.0, %v1670
        %v1672 = vrcp.pop %v1631
        %v1673 = vmul.f32 1.0, %v1672
        %v1674 = vrcp.pop %v1634
        %v1675 = vmul.f32 1.0, %v1674
        %v1676 = vrcp.pop %v1637
        %v1677 = vmul.f32 1.0, %v1676
        %v1678 = vrcp.pop %v1640
        %v1679 = vmul.f32 1.0, %v1678
        %v1680 = vrcp.pop %v1643
        %v1681 = vmul.f32 1.0, %v1680
        %v1682 = vrcp.pop %v1646
        %v1683 = vmul.f32 1.0, %v1682
        %v1684 = vrcp.pop %v1649
        %v1685 = vmul.f32 1.0, %v1684
        %v1686 = vrcp.pop %v1652
        %v1687 = vmul.f32 1.0, %v1686
        %v1688 = vrcp.pop %v1655
        %v1689 = vmul.f32 1.0, %v1688
        %v1690 = vrcp.pop %v1658
        %v1691 = vmul.f32 1.0, %v1690
        %v1692 = vrcp.pop %v1661
        %v1693 = vmul.f32 1.0, %v1692
        %v1694 = vmul.f32 %v1551, %v1663
        %v1695 = vmul.f32 %v1553, %v1663
        %v1696 = vmul.f32 %v1555, %v1665
        %v1697 = vmul.f32 %v1557, %v1665
        %v1698 = vmul.f32 %v1559, %v1667
        %v1699 = vmul.f32 %v1561, %v1667
        %v1700 = vmul.f32 %v1563, %v1669
        %v1701 = vmul.f32 %v1565, %v1669
        %v1702 = vmul.f32 %v1567, %v1671
        %v1703 = vmul.f32 %v1569, %v1671
        %v1704 = vmul.f32 %v1571, %v1673
        %v1705 = vmul.f32 %v1573, %v1673
        %v1706 = vmul.f32 %v1575, %v1675
        %v1707 = vmul.f32 %v1577, %v1675
        %v1708 = vmul.f32 %v1579, %v1677
        %v1709 = vmul.f32 %v1581, %v1677
        %v1710 = vmul.f32 %v1583, %v1679
        %v1711 = vmul.f32 %v1585, %v1679
        %v1712 = vmul.f32 %v1587, %v1681
        %v1713 = vmul.f32 %v1589, %v1681
        %v1714 = vmul.f32 %v1591, %v1683
        %v1715 = vmul.f32 %v1593, %v1683
        %v1716 = vmul.f32 %v1595, %v1685
        %v1717 = vmul.f32 %v1597, %v1685
        %v1718 = vmul.f32 %v1599, %v1687
        %v1719 = vmul.f32 %v1601, %v1687
        %v1720 = vmul.f32 %v1603, %v1689
        %v1721 = vmul.f32 %v1605, %v1689
        %v1722 = vmul.f32 %v1607, %v1691
        %v1723 = vmul.f32 %v1609, %v1691
        %v1724 = vmul.f32 %v1611, %v1693
        %v1725 = vmul.f32 %v1613, %v1693
        %v1726 = vpack.c.bf16 %v1696, %v1694
        %v1727 = vpack.c.bf16 %v1697, %v1695
        %v1728 = vpack.c.bf16 %v1700, %v1698
        %v1729 = vpack.c.bf16 %v1701, %v1699
        %v1730 = vpack.c.bf16 %v1704, %v1702
        %v1731 = vpack.c.bf16 %v1705, %v1703
        %v1732 = vpack.c.bf16 %v1708, %v1706
        %v1733 = vpack.c.bf16 %v1709, %v1707
        %v1734 = vpack.c.bf16 %v1712, %v1710
        %v1735 = vpack.c.bf16 %v1713, %v1711
        %v1736 = vpack.c.bf16 %v1716, %v1714
        %v1737 = vpack.c.bf16 %v1717, %v1715
        %v1738 = vpack.c.bf16 %v1720, %v1718
        %v1739 = vpack.c.bf16 %v1721, %v1719
        %v1740 = vpack.c.bf16 %v1724, %v1722
        %v1741 = vpack.c.bf16 %v1725, %v1723
        %v1742 = vld [vmem:[#allocation3] sm:$0xff]
        %v1743 = vld [vmem:[#allocation3 + $0x8] sm:$0xff]
        %v1744 = vld [vmem:[#allocation3 + $0x10] sm:$0xff]
        %v1745 = vld [vmem:[#allocation3 + $0x18] sm:$0xff]
        %v1746 = vld [vmem:[#allocation3 + $0x20] sm:$0xff]
        %v1747 = vld [vmem:[#allocation3 + $0x28] sm:$0xff]
        %v1748 = vld [vmem:[#allocation3 + $0x30] sm:$0xff]
        %v1749 = vld [vmem:[#allocation3 + $0x38] sm:$0xff]
        %v1750 = vld [vmem:[#allocation3 + $0x40] sm:$0xff]
        %v1751 = vld [vmem:[#allocation3 + $0x48] sm:$0xff]
        %v1752 = vld [vmem:[#allocation3 + $0x50] sm:$0xff]
        %v1753 = vld [vmem:[#allocation3 + $0x58] sm:$0xff]
        %v1754 = vld [vmem:[#allocation3 + $0x60] sm:$0xff]
        %v1755 = vld [vmem:[#allocation3 + $0x68] sm:$0xff]
        %v1756 = vld [vmem:[#allocation3 + $0x70] sm:$0xff]
        %v1757 = vld [vmem:[#allocation3 + $0x78] sm:$0xff]
        %1758 = vmatprep.subr.bf16.mxu0 0
        %1759 = vmatpush1.bf16.msra.mxu0 %v1742
        %1760 = vmatprep.subr.bf16.mxu0 0
        %1761 = vmatpush1.bf16.msra.mxu0 %v1743
        %1762 = vmatprep.subr.bf16.mxu0 0
        %1763 = vmatpush1.bf16.msra.mxu0 %v1744
        %1764 = vmatprep.subr.bf16.mxu0 0
        %1765 = vmatpush1.bf16.msra.mxu0 %v1745
        %1766 = vmatprep.subr.bf16.mxu0 0
        %1767 = vmatpush1.bf16.msra.mxu0 %v1746
        %1768 = vmatprep.subr.bf16.mxu0 0
        %1769 = vmatpush1.bf16.msra.mxu0 %v1747
        %1770 = vmatprep.subr.bf16.mxu0 0
        %1771 = vmatpush1.bf16.msra.mxu0 %v1748
        %1772 = vmatprep.subr.bf16.mxu0 0
        %1773 = vmatpush1.bf16.msra.mxu0 %v1749
        %1774 = vmatprep.subr.bf16.mxu0 0
        %1775 = vmatpush1.bf16.msra.mxu0 %v1750
        %1776 = vmatprep.subr.bf16.mxu0 0
        %1777 = vmatpush1.bf16.msra.mxu0 %v1751
        %1778 = vmatprep.subr.bf16.mxu0 0
        %1779 = vmatpush1.bf16.msra.mxu0 %v1752
        %1780 = vmatprep.subr.bf16.mxu0 0
        %1781 = vmatpush1.bf16.msra.mxu0 %v1753
        %1782 = vmatprep.subr.bf16.mxu0 0
        %1783 = vmatpush1.bf16.msra.mxu0 %v1754
        %1784 = vmatprep.subr.bf16.mxu0 0
        %1785 = vmatpush1.bf16.msra.mxu0 %v1755
        %1786 = vmatprep.subr.bf16.mxu0 0
        %1787 = vmatpush1.bf16.msra.mxu0 %v1756
        %1788 = vmatprep.subr.bf16.mxu0 0
        %1789 = vmatpush1.bf16.msra.mxu0 %v1757
        %1790 = vmatprep.mubr.bf16.mxu0 %v1727
        %1791 = vmatmul.mubr.bf16.gmra.mrb[0].mxu0 %v1726
        %v1792 = vpop.f32.mrb[0].mxu0
        %v1793 = vadd.f32 0.0, %v1792
        %v1794 = vpop.f32.mrb[0].mxu0
        %v1795 = vpop.f32.mrb[0].mxu0
        %v1796 = vadd.f32 0.0, %v1795
        %v1797 = vpop.f32.mrb[0].mxu0
        %1798 = vmatprep.mubr.bf16.mxu0 %v1729
        %1799 = vmatmul.mubr.bf16.gmra.mrb[0].mxu0 %v1728
        %v1800 = vpop.f32.mrb[0].mxu0
        %v1801 = vadd.f32 0.0, %v1800
        %v1802 = vpop.f32.mrb[0].mxu0
        %v1803 = vpop.f32.mrb[0].mxu0
        %v1804 = vadd.f32 0.0, %v1803
        %v1805 = vpop.f32.mrb[0].mxu0
        %1806 = vmatprep.mubr.bf16.mxu0 %v1731
        %1807 = vmatmul.mubr.bf16.gmra.mrb[0].mxu0 %v1730
        %v1808 = vpop.f32.mrb[0].mxu0
        %v1809 = vadd.f32 0.0, %v1808
        %v1810 = vpop.f32.mrb[0].mxu0
        %v1811 = vpop.f32.mrb[0].mxu0
        %v1812 = vadd.f32 0.0, %v1811
        %v1813 = vpop.f32.mrb[0].mxu0
        %1814 = vmatprep.mubr.bf16.mxu0 %v1733
        %1815 = vmatmul.mubr.bf16.gmra.mrb[0].mxu0 %v1732
        %v1816 = vpop.f32.mrb[0].mxu0
        %v1817 = vadd.f32 0.0, %v1816
        %v1818 = vpop.f32.mrb[0].mxu0
        %v1819 = vpop.f32.mrb[0].mxu0
        %v1820 = vadd.f32 0.0, %v1819
        %v1821 = vpop.f32.mrb[0].mxu0
        %1822 = vmatprep.mubr.bf16.mxu0 %v1735
        %1823 = vmatmul.mubr.bf16.gmra.mrb[0].mxu0 %v1734
        %v1824 = vpop.f32.mrb[0].mxu0
        %v1825 = vadd.f32 0.0, %v1824
        %v1826 = vpop.f32.mrb[0].mxu0
        %v1827 = vpop.f32.mrb[0].mxu0
        %v1828 = vadd.f32 0.0, %v1827
        %v1829 = vpop.f32.mrb[0].mxu0
        %1830 = vmatprep.mubr.bf16.mxu0 %v1737
        %1831 = vmatmul.mubr.bf16.gmra.mrb[0].mxu0 %v1736
        %v1832 = vpop.f32.mrb[0].mxu0
        %v1833 = vadd.f32 0.0, %v1832
        %v1834 = vpop.f32.mrb[0].mxu0
        %v1835 = vpop.f32.mrb[0].mxu0
        %v1836 = vadd.f32 0.0, %v1835
        %v1837 = vpop.f32.mrb[0].mxu0
        %1838 = vmatprep.mubr.bf16.mxu0 %v1739
        %1839 = vmatmul.mubr.bf16.gmra.mrb[0].mxu0 %v1738
        %v1840 = vpop.f32.mrb[0].mxu0
        %v1841 = vadd.f32 0.0, %v1840
        %v1842 = vpop.f32.mrb[0].mxu0
        %v1843 = vpop.f32.mrb[0].mxu0
        %v1844 = vadd.f32 0.0, %v1843
        %v1845 = vpop.f32.mrb[0].mxu0
        %1846 = vmatprep.mubr.bf16.mxu0 %v1741
        %1847 = vmatmul.mubr.bf16.gmra.mrb[0].mxu0 %v1740
        %v1848 = vpop.f32.mrb[0].mxu0
        %v1849 = vadd.f32 0.0, %v1848
        %v1850 = vpop.f32.mrb[0].mxu0
        %v1851 = vpop.f32.mrb[0].mxu0
        %v1852 = vadd.f32 0.0, %v1851
        %v1853 = vpop.f32.mrb[0].mxu0
        %1854 = vdwg.mxu0
        %v1855 = vpack.c.bf16 %v1796, %v1793
        %v1856 = vpack.c.bf16 %v1804, %v1801
        %v1857 = vpack.c.bf16 %v1812, %v1809
        %v1858 = vpack.c.bf16 %v1820, %v1817
        %v1859 = vpack.c.bf16 %v1828, %v1825
        %v1860 = vpack.c.bf16 %v1836, %v1833
        %v1861 = vpack.c.bf16 %v1844, %v1841
        %v1862 = vpack.c.bf16 %v1852, %v1849
        %1863 = vst.msk [vmem:[#allocation4] sm:$0xff] %vm1284, %v1855
        %1864 = vst.msk [vmem:[#allocation4 + $0x8] sm:$0xff] %vm1284, %v1856
        %1865 = vst.msk [vmem:[#allocation4 + $0x10] sm:$0xff] %vm1284, %v1857
        %1866 = vst.msk [vmem:[#allocation4 + $0x18] sm:$0xff] %vm1284, %v1858
        %1867 = vst.msk [vmem:[#allocation4 + $0x20] sm:$0xff] %vm1284, %v1859
        %1868 = vst.msk [vmem:[#allocation4 + $0x28] sm:$0xff] %vm1284, %v1860
        %1869 = vst.msk [vmem:[#allocation4 + $0x30] sm:$0xff] %vm1284, %v1861
        %1870 = vst.msk [vmem:[#allocation4 + $0x38] sm:$0xff] %vm1284, %v1862
        %s1871 = scalar_lea.vmem [#allocation2], 128
        %v1872 = vld [vmem:[%s1871] sm:$0xff]
        %v1873 = vld [vmem:[%s1871 + $0x8] sm:$0xff]
        %v1874 = vld [vmem:[%s1871 + $0x10] sm:$0xff]
        %v1875 = vld [vmem:[%s1871 + $0x18] sm:$0xff]
        %v1876 = vld [vmem:[%s1871 + $0x20] sm:$0xff]
        %v1877 = vld [vmem:[%s1871 + $0x28] sm:$0xff]
        %v1878 = vld [vmem:[%s1871 + $0x30] sm:$0xff]
        %v1879 = vld [vmem:[%s1871 + $0x38] sm:$0xff]
        %v1880 = vld [vmem:[%s1871 + $0x40] sm:$0xff]
        %v1881 = vld [vmem:[%s1871 + $0x48] sm:$0xff]
        %v1882 = vld [vmem:[%s1871 + $0x50] sm:$0xff]
        %v1883 = vld [vmem:[%s1871 + $0x58] sm:$0xff]
        %v1884 = vld [vmem:[%s1871 + $0x60] sm:$0xff]
        %v1885 = vld [vmem:[%s1871 + $0x68] sm:$0xff]
        %v1886 = vld [vmem:[%s1871 + $0x70] sm:$0xff]
        %v1887 = vld [vmem:[%s1871 + $0x78] sm:$0xff]
        %1896 = vrot.lane.b32.xlu0 %v1260, 64
        %v1897 = vpop.permute.xlu0 %1896
        %1898 = vrot.lane.b32.xlu0 %v1261, 64
        %v1899 = vpop.permute.xlu0 %1898
        %1900 = vrot.lane.b32.xlu0 %v1262, 64
        %v1901 = vpop.permute.xlu0 %1900
        %1902 = vrot.lane.b32.xlu0 %v1263, 64
        %v1903 = vpop.permute.xlu0 %1902
        %1904 = vrot.lane.b32.xlu0 %v1264, 64
        %v1905 = vpop.permute.xlu0 %1904
        %1906 = vrot.lane.b32.xlu0 %v1265, 64
        %v1907 = vpop.permute.xlu0 %1906
        %1908 = vrot.lane.b32.xlu0 %v1266, 64
        %v1909 = vpop.permute.xlu0 %1908
        %1910 = vrot.lane.b32.xlu0 %v1267, 64
        %v1911 = vpop.permute.xlu0 %1910
        %v1913 = vsel %vm1284, %v1897, 0
        %v1916 = vsel %vm1284, %v1899, 0
        %v1919 = vsel %vm1284, %v1901, 0
        %v1922 = vsel %vm1284, %v1903, 0
        %v1925 = vsel %vm1284, %v1905, 0
        %v1928 = vsel %vm1284, %v1907, 0
        %v1931 = vsel %vm1284, %v1909, 0
        %v1934 = vsel %vm1284, %v1911, 0
        %v1937 = vsel %vm1284, %v1872, 0
        %v1940 = vsel %vm1284, %v1873, 0
        %v1943 = vsel %vm1284, %v1874, 0
        %v1946 = vsel %vm1284, %v1875, 0
        %v1949 = vsel %vm1284, %v1876, 0
        %v1952 = vsel %vm1284, %v1877, 0
        %v1955 = vsel %vm1284, %v1878, 0
        %v1958 = vsel %vm1284, %v1879, 0
        %v1961 = vsel %vm1284, %v1880, 0
        %v1964 = vsel %vm1284, %v1881, 0
        %v1967 = vsel %vm1284, %v1882, 0
        %v1970 = vsel %vm1284, %v1883, 0
        %v1973 = vsel %vm1284, %v1884, 0
        %v1976 = vsel %vm1284, %v1885, 0
        %v1979 = vsel %vm1284, %v1886, 0
        %v1982 = vsel %vm1284, %v1887, 0
        %1984 = vmatprep.subr.bf16.mxu0 0
        %1985 = vmatpush1.bf16.xpose.msra.mxu0 %v1937
        %1986 = vmatprep.subr.bf16.mxu0 0
        %1987 = vmatpush1.bf16.xpose.msra.mxu0 %v1940
        %1988 = vmatprep.subr.bf16.mxu0 0
        %1989 = vmatpush1.bf16.xpose.msra.mxu0 %v1943
        %1990 = vmatprep.subr.bf16.mxu0 0
        %1991 = vmatpush1.bf16.xpose.msra.mxu0 %v1946
        %1992 = vmatprep.subr.bf16.mxu0 0
        %1993 = vmatpush1.bf16.xpose.msra.mxu0 %v1949
        %1994 = vmatprep.subr.bf16.mxu0 0
        %1995 = vmatpush1.bf16.xpose.msra.mxu0 %v1952
        %1996 = vmatprep.subr.bf16.mxu0 0
        %1997 = vmatpush1.bf16.xpose.msra.mxu0 %v1955
        %1998 = vmatprep.subr.bf16.mxu0 0
        %1999 = vmatpush1.bf16.xpose.msra.mxu0 %v1958
        %2000 = vmatprep.subr.bf16.mxu0 0
        %2001 = vmatpush1.bf16.xpose.msra.mxu0 %v1961
        %2002 = vmatprep.subr.bf16.mxu0 0
        %2003 = vmatpush1.bf16.xpose.msra.mxu0 %v1964
        %2004 = vmatprep.subr.bf16.mxu0 0
        %2005 = vmatpush1.bf16.xpose.msra.mxu0 %v1967
        %2006 = vmatprep.subr.bf16.mxu0 0
        %2007 = vmatpush1.bf16.xpose.msra.mxu0 %v1970
        %2008 = vmatprep.subr.bf16.mxu0 0
        %2009 = vmatpush1.bf16.xpose.msra.mxu0 %v1973
        %2010 = vmatprep.subr.bf16.mxu0 0
        %2011 = vmatpush1.bf16.xpose.msra.mxu0 %v1976
        %2012 = vmatprep.subr.bf16.mxu0 0
        %2013 = vmatpush1.bf16.xpose.msra.mxu0 %v1979
        %2014 = vmatprep.subr.bf16.mxu0 0
        %2015 = vmatpush1.bf16.xpose.msra.mxu0 %v1982
        %2016 = vmatprep.mubr.bf16.mxu0 0
        %2017 = vmatmul.mubr.bf16.gmra.mrb[0].mxu0 %v1913
        %v2018 = vpop.f32.mrb[0].mxu0
        %v2019 = vadd.f32 0.0, %v2018
        %v2020 = vpop.f32.mrb[0].mxu0
        %v2021 = vadd.f32 0.0, %v2020
        %v2022 = vpop.f32.mrb[0].mxu0
        %v2023 = vadd.f32 0.0, %v2022
        %v2024 = vpop.f32.mrb[0].mxu0
        %v2025 = vadd.f32 0.0, %v2024
        %2026 = vmatprep.mubr.bf16.mxu0 0
        %2027 = vmatmul.mubr.bf16.gmra.mrb[0].mxu0 %v1916
        %v2028 = vpop.f32.mrb[0].mxu0
        %v2029 = vadd.f32 0.0, %v2028
        %v2030 = vpop.f32.mrb[0].mxu0
        %v2031 = vadd.f32 0.0, %v2030
        %v2032 = vpop.f32.mrb[0].mxu0
        %v2033 = vadd.f32 0.0, %v2032
        %v2034 = vpop.f32.mrb[0].mxu0
        %v2035 = vadd.f32 0.0, %v2034
        %2036 = vmatprep.mubr.bf16.mxu0 0
        %2037 = vmatmul.mubr.bf16.gmra.mrb[0].mxu0 %v1919
        %v2038 = vpop.f32.mrb[0].mxu0
        %v2039 = vadd.f32 0.0, %v2038
        %v2040 = vpop.f32.mrb[0].mxu0
        %v2041 = vadd.f32 0.0, %v2040
        %v2042 = vpop.f32.mrb[0].mxu0
        %v2043 = vadd.f32 0.0, %v2042
        %v2044 = vpop.f32.mrb[0].mxu0
        %v2045 = vadd.f32 0.0, %v2044
        %2046 = vmatprep.mubr.bf16.mxu0 0
        %2047 = vmatmul.mubr.bf16.gmra.mrb[0].mxu0 %v1922
        %v2048 = vpop.f32.mrb[0].mxu0
        %v2049 = vadd.f32 0.0, %v2048
        %v2050 = vpop.f32.mrb[0].mxu0
        %v2051 = vadd.f32 0.0, %v2050
        %v2052 = vpop.f32.mrb[0].mxu0
        %v2053 = vadd.f32 0.0, %v2052
        %v2054 = vpop.f32.mrb[0].mxu0
        %v2055 = vadd.f32 0.0, %v2054
        %2056 = vmatprep.mubr.bf16.mxu0 0
        %2057 = vmatmul.mubr.bf16.gmra.mrb[0].mxu0 %v1925
        %v2058 = vpop.f32.mrb[0].mxu0
        %v2059 = vadd.f32 0.0, %v2058
        %v2060 = vpop.f32.mrb[0].mxu0
        %v2061 = vadd.f32 0.0, %v2060
        %v2062 = vpop.f32.mrb[0].mxu0
        %v2063 = vadd.f32 0.0, %v2062
        %v2064 = vpop.f32.mrb[0].mxu0
        %v2065 = vadd.f32 0.0, %v2064
        %2066 = vmatprep.mubr.bf16.mxu0 0
        %2067 = vmatmul.mubr.bf16.gmra.mrb[0].mxu0 %v1928
        %v2068 = vpop.f32.mrb[0].mxu0
        %v2069 = vadd.f32 0.0, %v2068
        %v2070 = vpop.f32.mrb[0].mxu0
        %v2071 = vadd.f32 0.0, %v2070
        %v2072 = vpop.f32.mrb[0].mxu0
        %v2073 = vadd.f32 0.0, %v2072
        %v2074 = vpop.f32.mrb[0].mxu0
        %v2075 = vadd.f32 0.0, %v2074
        %2076 = vmatprep.mubr.bf16.mxu0 0
        %2077 = vmatmul.mubr.bf16.gmra.mrb[0].mxu0 %v1931
        %v2078 = vpop.f32.mrb[0].mxu0
        %v2079 = vadd.f32 0.0, %v2078
        %v2080 = vpop.f32.mrb[0].mxu0
        %v2081 = vadd.f32 0.0, %v2080
        %v2082 = vpop.f32.mrb[0].mxu0
        %v2083 = vadd.f32 0.0, %v2082
        %v2084 = vpop.f32.mrb[0].mxu0
        %v2085 = vadd.f32 0.0, %v2084
        %2086 = vmatprep.mubr.bf16.mxu0 0
        %2087 = vmatmul.mubr.bf16.gmra.mrb[0].mxu0 %v1934
        %v2088 = vpop.f32.mrb[0].mxu0
        %v2089 = vadd.f32 0.0, %v2088
        %v2090 = vpop.f32.mrb[0].mxu0
        %v2091 = vadd.f32 0.0, %v2090
        %v2092 = vpop.f32.mrb[0].mxu0
        %v2093 = vadd.f32 0.0, %v2092
        %v2094 = vpop.f32.mrb[0].mxu0
        %v2095 = vadd.f32 0.0, %v2094
        %2096 = vdwg.mxu0
        %v2097 = vmax.f32 %v2019, %v2021
        %2098 = vmax.xlane.f32.xlu0 %v2097
        %v2099 = vpop.xlane.xlu0 %2098
        %v2100 = vmax.f32 %v2023, %v2025
        %2101 = vmax.xlane.f32.xlu0 %v2100
        %v2102 = vpop.xlane.xlu0 %2101
        %v2103 = vmax.f32 %v2029, %v2031
        %2104 = vmax.xlane.f32.xlu0 %v2103
        %v2105 = vpop.xlane.xlu0 %2104
        %v2106 = vmax.f32 %v2033, %v2035
        %2107 = vmax.xlane.f32.xlu0 %v2106
        %v2108 = vpop.xlane.xlu0 %2107
        %v2109 = vmax.f32 %v2039, %v2041
        %2110 = vmax.xlane.f32.xlu0 %v2109
        %v2111 = vpop.xlane.xlu0 %2110
        %v2112 = vmax.f32 %v2043, %v2045
        %2113 = vmax.xlane.f32.xlu0 %v2112
        %v2114 = vpop.xlane.xlu0 %2113
        %v2115 = vmax.f32 %v2049, %v2051
        %2116 = vmax.xlane.f32.xlu0 %v2115
        %v2117 = vpop.xlane.xlu0 %2116
        %v2118 = vmax.f32 %v2053, %v2055
        %2119 = vmax.xlane.f32.xlu0 %v2118
        %v2120 = vpop.xlane.xlu0 %2119
        %v2121 = vmax.f32 %v2059, %v2061
        %2122 = vmax.xlane.f32.xlu0 %v2121
        %v2123 = vpop.xlane.xlu0 %2122
        %v2124 = vmax.f32 %v2063, %v2065
        %2125 = vmax.xlane.f32.xlu0 %v2124
        %v2126 = vpop.xlane.xlu0 %2125
        %v2127 = vmax.f32 %v2069, %v2071
        %2128 = vmax.xlane.f32.xlu0 %v2127
        %v2129 = vpop.xlane.xlu0 %2128
        %v2130 = vmax.f32 %v2073, %v2075
        %2131 = vmax.xlane.f32.xlu0 %v2130
        %v2132 = vpop.xlane.xlu0 %2131
        %v2133 = vmax.f32 %v2079, %v2081
        %2134 = vmax.xlane.f32.xlu0 %v2133
        %v2135 = vpop.xlane.xlu0 %2134
        %v2136 = vmax.f32 %v2083, %v2085
        %2137 = vmax.xlane.f32.xlu0 %v2136
        %v2138 = vpop.xlane.xlu0 %2137
        %v2139 = vmax.f32 %v2089, %v2091
        %2140 = vmax.xlane.f32.xlu0 %v2139
        %v2141 = vpop.xlane.xlu0 %2140
        %v2142 = vmax.f32 %v2093, %v2095
        %2143 = vmax.xlane.f32.xlu0 %v2142
        %v2144 = vpop.xlane.xlu0 %2143
        %v2145 = vsub.f32 %v2019, %v2099
        %v2146 = vsub.f32 %v2021, %v2099
        %v2147 = vsub.f32 %v2023, %v2102
        %v2148 = vsub.f32 %v2025, %v2102
        %v2149 = vsub.f32 %v2029, %v2105
        %v2150 = vsub.f32 %v2031, %v2105
        %v2151 = vsub.f32 %v2033, %v2108
        %v2152 = vsub.f32 %v2035, %v2108
        %v2153 = vsub.f32 %v2039, %v2111
        %v2154 = vsub.f32 %v2041, %v2111
        %v2155 = vsub.f32 %v2043, %v2114
        %v2156 = vsub.f32 %v2045, %v2114
        %v2157 = vsub.f32 %v2049, %v2117
        %v2158 = vsub.f32 %v2051, %v2117
        %v2159 = vsub.f32 %v2053, %v2120
        %v2160 = vsub.f32 %v2055, %v2120
        %v2161 = vsub.f32 %v2059, %v2123
        %v2162 = vsub.f32 %v2061, %v2123
        %v2163 = vsub.f32 %v2063, %v2126
        %v2164 = vsub.f32 %v2065, %v2126
        %v2165 = vsub.f32 %v2069, %v2129
        %v2166 = vsub.f32 %v2071, %v2129
        %v2167 = vsub.f32 %v2073, %v2132
        %v2168 = vsub.f32 %v2075, %v2132
        %v2169 = vsub.f32 %v2079, %v2135
        %v2170 = vsub.f32 %v2081, %v2135
        %v2171 = vsub.f32 %v2083, %v2138
        %v2172 = vsub.f32 %v2085, %v2138
        %v2173 = vsub.f32 %v2089, %v2141
        %v2174 = vsub.f32 %v2091, %v2141
        %v2175 = vsub.f32 %v2093, %v2144
        %v2176 = vsub.f32 %v2095, %v2144
        %v2177 = vmul.f32 %v2145, 1.442695
        %v2178 = vpow.pop %v2177
        %v2179 = vmul.f32 %v2146, 1.442695
        %v2180 = vpow.pop %v2179
        %v2181 = vmul.f32 %v2147, 1.442695
        %v2182 = vpow.pop %v2181
        %v2183 = vmul.f32 %v2148, 1.442695
        %v2184 = vpow.pop %v2183
        %v2185 = vmul.f32 %v2149, 1.442695
        %v2186 = vpow.pop %v2185
        %v2187 = vmul.f32 %v2150, 1.442695
        %v2188 = vpow.pop %v2187
        %v2189 = vmul.f32 %v2151, 1.442695
        %v2190 = vpow.pop %v2189
        %v2191 = vmul.f32 %v2152, 1.442695
        %v2192 = vpow.pop %v2191
        %v2193 = vmul.f32 %v2153, 1.442695
        %v2194 = vpow.pop %v2193
        %v2195 = vmul.f32 %v2154, 1.442695
        %v2196 = vpow.pop %v2195
        %v2197 = vmul.f32 %v2155, 1.442695
        %v2198 = vpow.pop %v2197
        %v2199 = vmul.f32 %v2156, 1.442695
        %v2200 = vpow.pop %v2199
        %v2201 = vmul.f32 %v2157, 1.442695
        %v2202 = vpow.pop %v2201
        %v2203 = vmul.f32 %v2158, 1.442695
        %v2204 = vpow.pop %v2203
        %v2205 = vmul.f32 %v2159, 1.442695
        %v2206 = vpow.pop %v2205
        %v2207 = vmul.f32 %v2160, 1.442695
        %v2208 = vpow.pop %v2207
        %v2209 = vmul.f32 %v2161, 1.442695
        %v2210 = vpow.pop %v2209
        %v2211 = vmul.f32 %v2162, 1.442695
        %v2212 = vpow.pop %v2211
        %v2213 = vmul.f32 %v2163, 1.442695
        %v2214 = vpow.pop %v2213
        %v2215 = vmul.f32 %v2164, 1.442695
        %v2216 = vpow.pop %v2215
        %v2217 = vmul.f32 %v2165, 1.442695
        %v2218 = vpow.pop %v2217
        %v2219 = vmul.f32 %v2166, 1.442695
        %v2220 = vpow.pop %v2219
        %v2221 = vmul.f32 %v2167, 1.442695
        %v2222 = vpow.pop %v2221
        %v2223 = vmul.f32 %v2168, 1.442695
        %v2224 = vpow.pop %v2223
        %v2225 = vmul.f32 %v2169, 1.442695
        %v2226 = vpow.pop %v2225
        %v2227 = vmul.f32 %v2170, 1.442695
        %v2228 = vpow.pop %v2227
        %v2229 = vmul.f32 %v2171, 1.442695
        %v2230 = vpow.pop %v2229
        %v2231 = vmul.f32 %v2172, 1.442695
        %v2232 = vpow.pop %v2231
        %v2233 = vmul.f32 %v2173, 1.442695
        %v2234 = vpow.pop %v2233
        %v2235 = vmul.f32 %v2174, 1.442695
        %v2236 = vpow.pop %v2235
        %v2237 = vmul.f32 %v2175, 1.442695
        %v2238 = vpow.pop %v2237
        %v2239 = vmul.f32 %v2176, 1.442695
        %v2240 = vpow.pop %v2239
        %v2241 = vadd.f32 %v2178, %v2180
        %2242 = vadd.xlane.f32.xlu0 %v2241
        %v2243 = vpop.xlane.xlu0 %2242
        %v2244 = vadd.f32 %v2182, %v2184
        %2245 = vadd.xlane.f32.xlu0 %v2244
        %v2246 = vpop.xlane.xlu0 %2245
        %v2247 = vadd.f32 %v2186, %v2188
        %2248 = vadd.xlane.f32.xlu0 %v2247
        %v2249 = vpop.xlane.xlu0 %2248
        %v2250 = vadd.f32 %v2190, %v2192
        %2251 = vadd.xlane.f32.xlu0 %v2250
        %v2252 = vpop.xlane.xlu0 %2251
        %v2253 = vadd.f32 %v2194, %v2196
        %2254 = vadd.xlane.f32.xlu0 %v2253
        %v2255 = vpop.xlane.xlu0 %2254
        %v2256 = vadd.f32 %v2198, %v2200
        %2257 = vadd.xlane.f32.xlu0 %v2256
        %v2258 = vpop.xlane.xlu0 %2257
        %v2259 = vadd.f32 %v2202, %v2204
        %2260 = vadd.xlane.f32.xlu0 %v2259
        %v2261 = vpop.xlane.xlu0 %2260
        %v2262 = vadd.f32 %v2206, %v2208
        %2263 = vadd.xlane.f32.xlu0 %v2262
        %v2264 = vpop.xlane.xlu0 %2263
        %v2265 = vadd.f32 %v2210, %v2212
        %2266 = vadd.xlane.f32.xlu0 %v2265
        %v2267 = vpop.xlane.xlu0 %2266
        %v2268 = vadd.f32 %v2214, %v2216
        %2269 = vadd.xlane.f32.xlu0 %v2268
        %v2270 = vpop.xlane.xlu0 %2269
        %v2271 = vadd.f32 %v2218, %v2220
        %2272 = vadd.xlane.f32.xlu0 %v2271
        %v2273 = vpop.xlane.xlu0 %2272
        %v2274 = vadd.f32 %v2222, %v2224
        %2275 = vadd.xlane.f32.xlu0 %v2274
        %v2276 = vpop.xlane.xlu0 %2275
        %v2277 = vadd.f32 %v2226, %v2228
        %2278 = vadd.xlane.f32.xlu0 %v2277
        %v2279 = vpop.xlane.xlu0 %2278
        %v2280 = vadd.f32 %v2230, %v2232
        %2281 = vadd.xlane.f32.xlu0 %v2280
        %v2282 = vpop.xlane.xlu0 %2281
        %v2283 = vadd.f32 %v2234, %v2236
        %2284 = vadd.xlane.f32.xlu0 %v2283
        %v2285 = vpop.xlane.xlu0 %2284
        %v2286 = vadd.f32 %v2238, %v2240
        %2287 = vadd.xlane.f32.xlu0 %v2286
        %v2288 = vpop.xlane.xlu0 %2287
        %v2289 = vrcp.pop %v2243
        %v2290 = vmul.f32 1.0, %v2289
        %v2291 = vrcp.pop %v2246
        %v2292 = vmul.f32 1.0, %v2291
        %v2293 = vrcp.pop %v2249
        %v2294 = vmul.f32 1.0, %v2293
        %v2295 = vrcp.pop %v2252
        %v2296 = vmul.f32 1.0, %v2295
        %v2297 = vrcp.pop %v2255
        %v2298 = vmul.f32 1.0, %v2297
        %v2299 = vrcp.pop %v2258
        %v2300 = vmul.f32 1.0, %v2299
        %v2301 = vrcp.pop %v2261
        %v2302 = vmul.f32 1.0, %v2301
        %v2303 = vrcp.pop %v2264
        %v2304 = vmul.f32 1.0, %v2303
        %v2305 = vrcp.pop %v2267
        %v2306 = vmul.f32 1.0, %v2305
        %v2307 = vrcp.pop %v2270
        %v2308 = vmul.f32 1.0, %v2307
        %v2309 = vrcp.pop %v2273
        %v2310 = vmul.f32 1.0, %v2309
        %v2311 = vrcp.pop %v2276
        %v2312 = vmul.f32 1.0, %v2311
        %v2313 = vrcp.pop %v2279
        %v2314 = vmul.f32 1.0, %v2313
        %v2315 = vrcp.pop %v2282
        %v2316 = vmul.f32 1.0, %v2315
        %v2317 = vrcp.pop %v2285
        %v2318 = vmul.f32 1.0, %v2317
        %v2319 = vrcp.pop %v2288
        %v2320 = vmul.f32 1.0, %v2319
        %v2321 = vmul.f32 %v2178, %v2290
        %v2322 = vmul.f32 %v2180, %v2290
        %v2323 = vmul.f32 %v2182, %v2292
        %v2324 = vmul.f32 %v2184, %v2292
        %v2325 = vmul.f32 %v2186, %v2294
        %v2326 = vmul.f32 %v2188, %v2294
        %v2327 = vmul.f32 %v2190, %v2296
        %v2328 = vmul.f32 %v2192, %v2296
        %v2329 = vmul.f32 %v2194, %v2298
        %v2330 = vmul.f32 %v2196, %v2298
        %v2331 = vmul.f32 %v2198, %v2300
        %v2332 = vmul.f32 %v2200, %v2300
        %v2333 = vmul.f32 %v2202, %v2302
        %v2334 = vmul.f32 %v2204, %v2302
        %v2335 = vmul.f32 %v2206, %v2304
        %v2336 = vmul.f32 %v2208, %v2304
        %v2337 = vmul.f32 %v2210, %v2306
        %v2338 = vmul.f32 %v2212, %v2306
        %v2339 = vmul.f32 %v2214, %v2308
        %v2340 = vmul.f32 %v2216, %v2308
        %v2341 = vmul.f32 %v2218, %v2310
        %v2342 = vmul.f32 %v2220, %v2310
        %v2343 = vmul.f32 %v2222, %v2312
        %v2344 = vmul.f32 %v2224, %v2312
        %v2345 = vmul.f32 %v2226, %v2314
        %v2346 = vmul.f32 %v2228, %v2314
        %v2347 = vmul.f32 %v2230, %v2316
        %v2348 = vmul.f32 %v2232, %v2316
        %v2349 = vmul.f32 %v2234, %v2318
        %v2350 = vmul.f32 %v2236, %v2318
        %v2351 = vmul.f32 %v2238, %v2320
        %v2352 = vmul.f32 %v2240, %v2320
        %v2353 = vpack.c.bf16 %v2323, %v2321
        %v2354 = vpack.c.bf16 %v2324, %v2322
        %v2355 = vpack.c.bf16 %v2327, %v2325
        %v2356 = vpack.c.bf16 %v2328, %v2326
        %v2357 = vpack.c.bf16 %v2331, %v2329
        %v2358 = vpack.c.bf16 %v2332, %v2330
        %v2359 = vpack.c.bf16 %v2335, %v2333
        %v2360 = vpack.c.bf16 %v2336, %v2334
        %v2361 = vpack.c.bf16 %v2339, %v2337
        %v2362 = vpack.c.bf16 %v2340, %v2338
        %v2363 = vpack.c.bf16 %v2343, %v2341
        %v2364 = vpack.c.bf16 %v2344, %v2342
        %v2365 = vpack.c.bf16 %v2347, %v2345
        %v2366 = vpack.c.bf16 %v2348, %v2346
        %v2367 = vpack.c.bf16 %v2351, %v2349
        %v2368 = vpack.c.bf16 %v2352, %v2350
        %s2369 = scalar_lea.vmem [#allocation3], 128
        %v2370 = vld [vmem:[%s2369] sm:$0xff]
        %v2371 = vld [vmem:[%s2369 + $0x8] sm:$0xff]
        %v2372 = vld [vmem:[%s2369 + $0x10] sm:$0xff]
        %v2373 = vld [vmem:[%s2369 + $0x18] sm:$0xff]
        %v2374 = vld [vmem:[%s2369 + $0x20] sm:$0xff]
        %v2375 = vld [vmem:[%s2369 + $0x28] sm:$0xff]
        %v2376 = vld [vmem:[%s2369 + $0x30] sm:$0xff]
        %v2377 = vld [vmem:[%s2369 + $0x38] sm:$0xff]
        %v2378 = vld [vmem:[%s2369 + $0x40] sm:$0xff]
        %v2379 = vld [vmem:[%s2369 + $0x48] sm:$0xff]
        %v2380 = vld [vmem:[%s2369 + $0x50] sm:$0xff]
        %v2381 = vld [vmem:[%s2369 + $0x58] sm:$0xff]
        %v2382 = vld [vmem:[%s2369 + $0x60] sm:$0xff]
        %v2383 = vld [vmem:[%s2369 + $0x68] sm:$0xff]
        %v2384 = vld [vmem:[%s2369 + $0x70] sm:$0xff]
        %v2385 = vld [vmem:[%s2369 + $0x78] sm:$0xff]
        %2386 = vmatprep.subr.bf16.mxu0 0
        %2387 = vmatpush1.bf16.msra.mxu0 %v2370
        %2388 = vmatprep.subr.bf16.mxu0 0
        %2389 = vmatpush1.bf16.msra.mxu0 %v2371
        %2390 = vmatprep.subr.bf16.mxu0 0
        %2391 = vmatpush1.bf16.msra.mxu0 %v2372
        %2392 = vmatprep.subr.bf16.mxu0 0
        %2393 = vmatpush1.bf16.msra.mxu0 %v2373
        %2394 = vmatprep.subr.bf16.mxu0 0
        %2395 = vmatpush1.bf16.msra.mxu0 %v2374
        %2396 = vmatprep.subr.bf16.mxu0 0
        %2397 = vmatpush1.bf16.msra.mxu0 %v2375
        %2398 = vmatprep.subr.bf16.mxu0 0
        %2399 = vmatpush1.bf16.msra.mxu0 %v2376
        %2400 = vmatprep.subr.bf16.mxu0 0
        %2401 = vmatpush1.bf16.msra.mxu0 %v2377
        %2402 = vmatprep.subr.bf16.mxu0 0
        %2403 = vmatpush1.bf16.msra.mxu0 %v2378
        %2404 = vmatprep.subr.bf16.mxu0 0
        %2405 = vmatpush1.bf16.msra.mxu0 %v2379
        %2406 = vmatprep.subr.bf16.mxu0 0
        %2407 = vmatpush1.bf16.msra.mxu0 %v2380
        %2408 = vmatprep.subr.bf16.mxu0 0
        %2409 = vmatpush1.bf16.msra.mxu0 %v2381
        %2410 = vmatprep.subr.bf16.mxu0 0
        %2411 = vmatpush1.bf16.msra.mxu0 %v2382
        %2412 = vmatprep.subr.bf16.mxu0 0
        %2413 = vmatpush1.bf16.msra.mxu0 %v2383
        %2414 = vmatprep.subr.bf16.mxu0 0
        %2415 = vmatpush1.bf16.msra.mxu0 %v2384
        %2416 = vmatprep.subr.bf16.mxu0 0
        %2417 = vmatpush1.bf16.msra.mxu0 %v2385
        %2418 = vmatprep.mubr.bf16.mxu0 %v2354
        %2419 = vmatmul.mubr.bf16.gmra.mrb[0].mxu0 %v2353
        %v2420 = vpop.f32.mrb[0].mxu0
        %v2421 = vadd.f32 0.0, %v2420
        %v2422 = vpop.f32.mrb[0].mxu0
        %v2423 = vpop.f32.mrb[0].mxu0
        %v2424 = vadd.f32 0.0, %v2423
        %v2425 = vpop.f32.mrb[0].mxu0
        %2426 = vmatprep.mubr.bf16.mxu0 %v2356
        %2427 = vmatmul.mubr.bf16.gmra.mrb[0].mxu0 %v2355
        %v2428 = vpop.f32.mrb[0].mxu0
        %v2429 = vadd.f32 0.0, %v2428
        %v2430 = vpop.f32.mrb[0].mxu0
        %v2431 = vpop.f32.mrb[0].mxu0
        %v2432 = vadd.f32 0.0, %v2431
        %v2433 = vpop.f32.mrb[0].mxu0
        %2434 = vmatprep.mubr.bf16.mxu0 %v2358
        %2435 = vmatmul.mubr.bf16.gmra.mrb[0].mxu0 %v2357
        %v2436 = vpop.f32.mrb[0].mxu0
        %v2437 = vadd.f32 0.0, %v2436
        %v2438 = vpop.f32.mrb[0].mxu0
        %v2439 = vpop.f32.mrb[0].mxu0
        %v2440 = vadd.f32 0.0, %v2439
        %v2441 = vpop.f32.mrb[0].mxu0
        %2442 = vmatprep.mubr.bf16.mxu0 %v2360
        %2443 = vmatmul.mubr.bf16.gmra.mrb[0].mxu0 %v2359
        %v2444 = vpop.f32.mrb[0].mxu0
        %v2445 = vadd.f32 0.0, %v2444
        %v2446 = vpop.f32.mrb[0].mxu0
        %v2447 = vpop.f32.mrb[0].mxu0
        %v2448 = vadd.f32 0.0, %v2447
        %v2449 = vpop.f32.mrb[0].mxu0
        %2450 = vmatprep.mubr.bf16.mxu0 %v2362
        %2451 = vmatmul.mubr.bf16.gmra.mrb[0].mxu0 %v2361
        %v2452 = vpop.f32.mrb[0].mxu0
        %v2453 = vadd.f32 0.0, %v2452
        %v2454 = vpop.f32.mrb[0].mxu0
        %v2455 = vpop.f32.mrb[0].mxu0
        %v2456 = vadd.f32 0.0, %v2455
        %v2457 = vpop.f32.mrb[0].mxu0
        %2458 = vmatprep.mubr.bf16.mxu0 %v2364
        %2459 = vmatmul.mubr.bf16.gmra.mrb[0].mxu0 %v2363
        %v2460 = vpop.f32.mrb[0].mxu0
        %v2461 = vadd.f32 0.0, %v2460
        %v2462 = vpop.f32.mrb[0].mxu0
        %v2463 = vpop.f32.mrb[0].mxu0
        %v2464 = vadd.f32 0.0, %v2463
        %v2465 = vpop.f32.mrb[0].mxu0
        %2466 = vmatprep.mubr.bf16.mxu0 %v2366
        %2467 = vmatmul.mubr.bf16.gmra.mrb[0].mxu0 %v2365
        %v2468 = vpop.f32.mrb[0].mxu0
        %v2469 = vadd.f32 0.0, %v2468
        %v2470 = vpop.f32.mrb[0].mxu0
        %v2471 = vpop.f32.mrb[0].mxu0
        %v2472 = vadd.f32 0.0, %v2471
        %v2473 = vpop.f32.mrb[0].mxu0
        %2474 = vmatprep.mubr.bf16.mxu0 %v2368
        %2475 = vmatmul.mubr.bf16.gmra.mrb[0].mxu0 %v2367
        %v2476 = vpop.f32.mrb[0].mxu0
        %v2477 = vadd.f32 0.0, %v2476
        %v2478 = vpop.f32.mrb[0].mxu0
        %v2479 = vpop.f32.mrb[0].mxu0
        %v2480 = vadd.f32 0.0, %v2479
        %v2481 = vpop.f32.mrb[0].mxu0
        %2482 = vdwg.mxu0
        %v2483 = vpack.c.bf16 %v2424, %v2421
        %v2484 = vpack.c.bf16 %v2432, %v2429
        %v2485 = vpack.c.bf16 %v2440, %v2437
        %v2486 = vpack.c.bf16 %v2448, %v2445
        %v2487 = vpack.c.bf16 %v2456, %v2453
        %v2488 = vpack.c.bf16 %v2464, %v2461
        %v2489 = vpack.c.bf16 %v2472, %v2469
        %v2490 = vpack.c.bf16 %v2480, %v2477
        %2499 = vrot.lane.b32.xlu0 %v2483, 64
        %v2500 = vpop.permute.xlu0 %2499
        %2501 = vrot.lane.b32.xlu0 %v2484, 64
        %v2502 = vpop.permute.xlu0 %2501
        %2503 = vrot.lane.b32.xlu0 %v2485, 64
        %v2504 = vpop.permute.xlu0 %2503
        %2505 = vrot.lane.b32.xlu0 %v2486, 64
        %v2506 = vpop.permute.xlu0 %2505
        %2507 = vrot.lane.b32.xlu0 %v2487, 64
        %v2508 = vpop.permute.xlu0 %2507
        %2509 = vrot.lane.b32.xlu0 %v2488, 64
        %v2510 = vpop.permute.xlu0 %2509
        %2511 = vrot.lane.b32.xlu0 %v2489, 64
        %v2512 = vpop.permute.xlu0 %2511
        %2513 = vrot.lane.b32.xlu0 %v2490, 64
        %v2514 = vpop.permute.xlu0 %2513
        %vm2523 = vcmask 1048064
        %2524 = vst.msk [vmem:[#allocation4] sm:$0xff] %vm2523, %v2500
        %2525 = vst.msk [vmem:[#allocation4 + $0x8] sm:$0xff] %vm2523, %v2502
        %2526 = vst.msk [vmem:[#allocation4 + $0x10] sm:$0xff] %vm2523, %v2504
        %2527 = vst.msk [vmem:[#allocation4 + $0x18] sm:$0xff] %vm2523, %v2506
        %2528 = vst.msk [vmem:[#allocation4 + $0x20] sm:$0xff] %vm2523, %v2508
        %2529 = vst.msk [vmem:[#allocation4 + $0x28] sm:$0xff] %vm2523, %v2510
        %2530 = vst.msk [vmem:[#allocation4 + $0x30] sm:$0xff] %vm2523, %v2512
        %2531 = vst.msk [vmem:[#allocation4 + $0x38] sm:$0xff] %vm2523, %v2514
        %v2532 = vld [vmem:[#allocation4] sm:$0xff]
        %v2533 = vld [vmem:[#allocation4 + $0x8] sm:$0xff]
        %v2534 = vld [vmem:[#allocation4 + $0x10] sm:$0xff]
        %v2535 = vld [vmem:[#allocation4 + $0x18] sm:$0xff]
        %v2536 = vld [vmem:[#allocation4 + $0x20] sm:$0xff]
        %v2537 = vld [vmem:[#allocation4 + $0x28] sm:$0xff]
        %v2538 = vld [vmem:[#allocation4 + $0x30] sm:$0xff]
        %v2539 = vld [vmem:[#allocation4 + $0x38] sm:$0xff]
        %v2540 = vld [vmem:[#allocation13] sm:$0xf]
        %v2541 = vld [vmem:[#allocation13 + $0x4] sm:$0xf]
        %v2542 = vld [vmem:[#allocation13 + $0x8] sm:$0xf]
        %v2543 = vld [vmem:[#allocation13 + $0xc] sm:$0xf]
        %v2544 = vld [vmem:[#allocation13 + $0x10] sm:$0xf]
        %v2545 = vld [vmem:[#allocation13 + $0x14] sm:$0xf]
        %v2546 = vld [vmem:[#allocation13 + $0x18] sm:$0xf]
        %v2547 = vld [vmem:[#allocation13 + $0x1c] sm:$0xf]
        %v2548 = vld [vmem:[#allocation13 + $0x20] sm:$0xf]
        %v2549 = vld [vmem:[#allocation13 + $0x24] sm:$0xf]
        %v2550 = vld [vmem:[#allocation13 + $0x28] sm:$0xf]
        %v2551 = vld [vmem:[#allocation13 + $0x2c] sm:$0xf]
        %v2552 = vld [vmem:[#allocation13 + $0x30] sm:$0xf]
        %v2553 = vld [vmem:[#allocation13 + $0x34] sm:$0xf]
        %v2554 = vld [vmem:[#allocation13 + $0x38] sm:$0xf]
        %v2555 = vld [vmem:[#allocation13 + $0x3c] sm:$0xf]
        %v2556 = vld [vmem:[%s5] sm:$0x1]
        %v2558 = vlaneseq
        %v2559 = vshrl.u32 %v2558, 7
        %v2560 = vsub.s32 0, %v2559
        %v2561 = vrot.slane %v2556, %v2560
        %v2579 = vunpack.c.l.b16 %v2540
        %v2580 = vunpack.c.l.b16 %v2541
        %v2581 = vunpack.c.l.b16 %v2542
        %v2582 = vunpack.c.l.b16 %v2543
        %v2583 = vunpack.c.l.b16 %v2544
        %v2584 = vunpack.c.l.b16 %v2545
        %v2585 = vunpack.c.l.b16 %v2546
        %v2586 = vunpack.c.l.b16 %v2547
        %v2587 = vunpack.c.l.b16 %v2548
        %v2588 = vunpack.c.l.b16 %v2549
        %v2589 = vunpack.c.l.b16 %v2550
        %v2590 = vunpack.c.l.b16 %v2551
        %v2591 = vunpack.c.l.b16 %v2552
        %v2592 = vunpack.c.l.b16 %v2553
        %v2593 = vunpack.c.l.b16 %v2554
        %v2594 = vunpack.c.l.b16 %v2555
        %v2595 = vpack.c.b16 %v2580, %v2579
        %v2596 = vpack.c.b16 %v2582, %v2581
        %v2597 = vpack.c.b16 %v2584, %v2583
        %v2598 = vpack.c.b16 %v2586, %v2585
        %v2599 = vpack.c.b16 %v2588, %v2587
        %v2600 = vpack.c.b16 %v2590, %v2589
        %v2601 = vpack.c.b16 %v2592, %v2591
        %v2602 = vpack.c.b16 %v2594, %v2593
        %2611 = vmatprep.subr.bf16.mxu0 0
        %2612 = vmatpush1.bf16.msra.mxu0 %v2595
        %2613 = vmatprep.subr.bf16.mxu0 0
        %2614 = vmatpush1.bf16.msra.mxu0 %v2596
        %2615 = vmatprep.subr.bf16.mxu0 0
        %2616 = vmatpush1.bf16.msra.mxu0 %v2597
        %2617 = vmatprep.subr.bf16.mxu0 0
        %2618 = vmatpush1.bf16.msra.mxu0 %v2598
        %2619 = vmatprep.subr.bf16.mxu0 0
        %2620 = vmatpush1.bf16.msra.mxu0 %v2599
        %2621 = vmatprep.subr.bf16.mxu0 0
        %2622 = vmatpush1.bf16.msra.mxu0 %v2600
        %2623 = vmatprep.subr.bf16.mxu0 0
        %2624 = vmatpush1.bf16.msra.mxu0 %v2601
        %2625 = vmatprep.subr.bf16.mxu0 0
        %2626 = vmatpush1.bf16.msra.mxu0 %v2602
        %2627 = vmatprep.subr.bf16.mxu0 0
        %2628 = vmatpush1.bf16.msra.mxu0 0
        %2629 = vmatprep.subr.bf16.mxu0 0
        %2630 = vmatpush1.bf16.msra.mxu0 0
        %2631 = vmatprep.subr.bf16.mxu0 0
        %2632 = vmatpush1.bf16.msra.mxu0 0
        %2633 = vmatprep.subr.bf16.mxu0 0
        %2634 = vmatpush1.bf16.msra.mxu0 0
        %2635 = vmatprep.subr.bf16.mxu0 0
        %2636 = vmatpush1.bf16.msra.mxu0 0
        %2637 = vmatprep.subr.bf16.mxu0 0
        %2638 = vmatpush1.bf16.msra.mxu0 0
        %2639 = vmatprep.subr.bf16.mxu0 0
        %2640 = vmatpush1.bf16.msra.mxu0 0
        %2641 = vmatprep.subr.bf16.mxu0 0
        %2642 = vmatpush1.bf16.msra.mxu0 0
        %2643 = vmatprep.mubr.bf16.mxu0 0
        %2644 = vmatmul.mubr.bf16.gmra.mrb[0].mxu0 %v2532
        %v2645 = vpop.f32.mrb[0].mxu0
        %v2646 = vadd.f32 %v2561, %v2645
        %v2647 = vpop.f32.mrb[0].mxu0
        %v2648 = vpop.f32.mrb[0].mxu0
        %v2649 = vadd.f32 %v2561, %v2648
        %v2650 = vpop.f32.mrb[0].mxu0
        %2651 = vmatprep.mubr.bf16.mxu0 0
        %2652 = vmatmul.mubr.bf16.gmra.mrb[0].mxu0 %v2533
        %v2653 = vpop.f32.mrb[0].mxu0
        %v2654 = vadd.f32 %v2561, %v2653
        %v2655 = vpop.f32.mrb[0].mxu0
        %v2656 = vpop.f32.mrb[0].mxu0
        %v2657 = vadd.f32 %v2561, %v2656
        %v2658 = vpop.f32.mrb[0].mxu0
        %2659 = vmatprep.mubr.bf16.mxu0 0
        %2660 = vmatmul.mubr.bf16.gmra.mrb[0].mxu0 %v2534
        %v2661 = vpop.f32.mrb[0].mxu0
        %v2662 = vadd.f32 %v2561, %v2661
        %v2663 = vpop.f32.mrb[0].mxu0
        %v2664 = vpop.f32.mrb[0].mxu0
        %v2665 = vadd.f32 %v2561, %v2664
        %v2666 = vpop.f32.mrb[0].mxu0
        %2667 = vmatprep.mubr.bf16.mxu0 0
        %2668 = vmatmul.mubr.bf16.gmra.mrb[0].mxu0 %v2535
        %v2669 = vpop.f32.mrb[0].mxu0
        %v2670 = vadd.f32 %v2561, %v2669
        %v2671 = vpop.f32.mrb[0].mxu0
        %v2672 = vpop.f32.mrb[0].mxu0
        %v2673 = vadd.f32 %v2561, %v2672
        %v2674 = vpop.f32.mrb[0].mxu0
        %2675 = vmatprep.mubr.bf16.mxu0 0
        %2676 = vmatmul.mubr.bf16.gmra.mrb[0].mxu0 %v2536
        %v2677 = vpop.f32.mrb[0].mxu0
        %v2678 = vadd.f32 %v2561, %v2677
        %v2679 = vpop.f32.mrb[0].mxu0
        %v2680 = vpop.f32.mrb[0].mxu0
        %v2681 = vadd.f32 %v2561, %v2680
        %v2682 = vpop.f32.mrb[0].mxu0
        %2683 = vmatprep.mubr.bf16.mxu0 0
        %2684 = vmatmul.mubr.bf16.gmra.mrb[0].mxu0 %v2537
        %v2685 = vpop.f32.mrb[0].mxu0
        %v2686 = vadd.f32 %v2561, %v2685
        %v2687 = vpop.f32.mrb[0].mxu0
        %v2688 = vpop.f32.mrb[0].mxu0
        %v2689 = vadd.f32 %v2561, %v2688
        %v2690 = vpop.f32.mrb[0].mxu0
        %2691 = vmatprep.mubr.bf16.mxu0 0
        %2692 = vmatmul.mubr.bf16.gmra.mrb[0].mxu0 %v2538
        %v2693 = vpop.f32.mrb[0].mxu0
        %v2694 = vadd.f32 %v2561, %v2693
        %v2695 = vpop.f32.mrb[0].mxu0
        %v2696 = vpop.f32.mrb[0].mxu0
        %v2697 = vadd.f32 %v2561, %v2696
        %v2698 = vpop.f32.mrb[0].mxu0
        %2699 = vmatprep.mubr.bf16.mxu0 0
        %2700 = vmatmul.mubr.bf16.gmra.mrb[0].mxu0 %v2539
        %v2701 = vpop.f32.mrb[0].mxu0
        %v2702 = vadd.f32 %v2561, %v2701
        %v2703 = vpop.f32.mrb[0].mxu0
        %v2704 = vpop.f32.mrb[0].mxu0
        %v2705 = vadd.f32 %v2561, %v2704
        %v2706 = vpop.f32.mrb[0].mxu0
        %2707 = vdwg.mxu0
        %2708 = vst [vmem:[%s341] sm:$0xff] %v2646
        %2709 = vst [vmem:[%s341 + $0x8] sm:$0xff] %v2649
        %2710 = vst [vmem:[%s341 + $0x10] sm:$0xff] %v2654
        %2711 = vst [vmem:[%s341 + $0x18] sm:$0xff] %v2657
        %2712 = vst [vmem:[%s341 + $0x20] sm:$0xff] %v2662
        %2713 = vst [vmem:[%s341 + $0x28] sm:$0xff] %v2665
        %2714 = vst [vmem:[%s341 + $0x30] sm:$0xff] %v2670
        %2715 = vst [vmem:[%s341 + $0x38] sm:$0xff] %v2673
        %2716 = vst [vmem:[%s341 + $0x40] sm:$0xff] %v2678
        %2717 = vst [vmem:[%s341 + $0x48] sm:$0xff] %v2681
        %2718 = vst [vmem:[%s341 + $0x50] sm:$0xff] %v2686
        %2719 = vst [vmem:[%s341 + $0x58] sm:$0xff] %v2689
        %2720 = vst [vmem:[%s341 + $0x60] sm:$0xff] %v2694
        %2721 = vst [vmem:[%s341 + $0x68] sm:$0xff] %v2697
        %2722 = vst [vmem:[%s341 + $0x70] sm:$0xff] %v2702
        %2723 = vst [vmem:[%s341 + $0x78] sm:$0xff] %v2705
        %s2724 = sand.u32 %s178, 1
        %s2725 = scalar_lea.sflag [#allocation7], %s2724
        %s2726 = sand.u32 %s178, 1
        %s2727 = smul.addr %s2726, 128
        %s2728 = scalar_lea.vmem [#allocation14], %s2727
        // Predicated region
        $region69: #{tpu_custom_call.1} parent=43 // pred_check
          %p2729 = pneg %p188
        $region70: #{tpu_custom_call.1} parent=43 // pred_check_branch
          %2731 = sbr.rel (%p2729) target = $region72
        $region71: #{tpu_custom_call.1} parent=43 // pred_region
          %s2732 = smul.u32 16, %s30
          %s2734 = ssub.s32 2048, 2048
          %2735 = vsyncadd %s2725, %s2734
          %s2736 = smul.addr %s29, 32
          %s2737 = sadd.s32 %s2732, %s2736
          %s2738 = smul.addr %s2737, 128
          %s2739 = scalar_lea.hbm %s6, %s2738
          %s2740 = sshll.u32 %s2728, 4
          %s2741 = int_to_ptr.vmem [resolvable:$true] %s2740
          %2746 = dma.vmem_to_hbm [thread:$0]  %s2741, 2048, %s2739, %s2725, 128, 128, 8
        $region72: #{tpu_custom_call.1} parent=43 // pred_fallthru
          _
      $region44: #{tpu_custom_call.1} parent=5 // pred_fallthru
        _
      %p2747 = scmp.le.s32.totalorder 2, %s20
      // Predicated region
      $region73: #{tpu_custom_call.1} parent=5 // pred_check
        %p2748 = pneg %p2747
      $region74: #{tpu_custom_call.1} parent=5 // pred_check_branch
        %2750 = sbr.rel (%p2748) target = $region76
      $region75: #{tpu_custom_call.1} parent=5 // pred_region
        %s2751 = ssub.s32 %s20, 2
        // Predicated region
        $region77: #{tpu_custom_call.1} parent=75 // pred_check
          %p2752 = pneg %p194
        $region78: #{tpu_custom_call.1} parent=75 // pred_check_branch
          %2754 = sbr.rel (%p2752) target = $region80
        $region79: #{tpu_custom_call.1} parent=75 // pred_region
          %s2755 = sand.u32 %s179, 1
          %s2756 = scalar_lea.sflag [#allocation7], %s2755
          %s2757 = sand.u32 %s179, 1
          %s2758 = smul.addr %s2757, 128
          %s2759 = scalar_lea.vmem [#allocation14], %s2758
          %2760 = dma.done %s2756, 2048
        $region80: #{tpu_custom_call.1} parent=75 // pred_fallthru
          _
      $region76: #{tpu_custom_call.1} parent=5 // pred_fallthru
        _
    $region6: #{tpu_custom_call.1} parent=1 // loop_footer
      %s24 = sadd.s32 1, %s20
    $region7: #{tpu_custom_call.1} parent=1 // loop_footer_branch
      %19 = sbr.rel target = $region3
    $region8: #{tpu_custom_call.1} parent=1 // loop_exit
      _
    %2761 = vsyncpa [#allocation6], 1
    %s2762 = scalar_lea.sflag [#allocation6], 1
    %2763 = vsyncpa %s2762, 1
    %2764 = vsyncpa [#allocation9], 1
    %2765 = vsyncpa [#allocation12], 1
    %2766 = vsyncpa [#allocation7], 1
    %s2767 = scalar_lea.sflag [#allocation7], 1
    %2768 = vsyncpa %s2767, 1

</llo_original>
